<compile_context>
chip_gen: v5e
topology: v5e:2x2
jax: 0.10.0
libtpu: 0.0.40
codegen_flags: <defaults>
</compile_context>

<pallas_src>
import math
from functools import partial

import jax
import jax.numpy as jnp
from jax import lax
from jax.experimental import pallas as pl
from jax.experimental.pallas import tpu as pltpu

# ----------------------------- model config ---------------------------------
VOCAB    = 256
D_MODEL  = 128
N_HEAD   = 2
N_LAYERS = 3
DIM_FF   = 256
MAX_LEN  = 128
HD       = D_MODEL // N_HEAD
SCALE    = 1.0 / math.sqrt(HD)
LN_EPS   = 1e-5
NEG_BIG  = -1e30          # finite mask value (diagonal always allowed -> no NaN risk)

# Per perf review: bf16 weights (MXU-native on v5e/v6e/v7x, halves weight DMA /
# resident VMEM).  Elementwise math stays f32; f32 accumulation at every dot.
WEIGHT_DTYPE = jnp.bfloat16

T_SEQ = 8   # small example sequence length
B_SZ  = 2   # small example batch

# Row layout of the packed per-layer vector operand (L, N_VECS, D):
_LN1_W, _LN1_B, _BQ, _BK, _BV, _BO, _LN3_W, _LN3_B, _B2 = range(9)
N_VECS = 9


# ------------------------------ kernel helpers --------------------------------
def _ln(x, w, b):
    mu = jnp.mean(x, axis=-1, keepdims=True)
    var = jnp.mean((x - mu) ** 2, axis=-1, keepdims=True)
    return (x - mu) * lax.rsqrt(var + LN_EPS) * w + b


def _mm(a, w):
    """a @ w on the MXU; activations cast to the weight dtype, f32 accumulation."""
    return jnp.dot(a.astype(w.dtype), w, preferred_element_type=jnp.float32)


# ------------------------------ fused kernel ----------------------------------
def fused_forward_kernel(T, B,
                         ids_ref,    # (B*T, 1) int32   (batch-major: row = b*T + t)
                         emb_ref,    # (V, D)   f32     token embedding (gather)
                         emb_t_ref,  # (D, V)   WEIGHT_DTYPE  pre-transposed tied head
                         pos_ref,    # (B*T, D) f32     batch-replicated positional slab
                         neg_ref,    # (B*T, B*T) f32   block-diag causal mask (0 / NEG_BIG)
                         hmask_ref,  # (N_HEAD, D) f32  per-head lane masks
                         vecs_ref,   # (1, 9, D) f32    this layer's packed LN/bias vectors
                         b1_ref,     # (1, 1, FF) f32   this layer's FFN first bias
                         wqkv_ref,   # (1, D, 3D)       WEIGHT_DTYPE
                         wo_ref,     # (1, D, D)
                         w1_ref,     # (1, D, FF)
                         w2_ref,     # (1, FF, D)
                         normf_ref,  # (2, D) f32       final LN weight / bias
                         out_ref,    # (B*T, V) f32     logits (written at last layer)
                         x_ref):     # (B*T, D) f32     VMEM scratch: running activations
    BT = B * T
    l = pl.program_id(0)

    # ---- first layer: embedding gather (one-hot matmul, exact) + pos add ----
    @pl.when(l == 0)
    def _():
        ids = ids_ref[...]                                               # (BT, 1)
        onehot = (ids == lax.broadcasted_iota(jnp.int32, (BT, VOCAB), 1)
                  ).astype(jnp.float32)                                  # (BT, V)
        tok = jnp.dot(onehot, emb_ref[...], preferred_element_type=jnp.float32)
        x_ref[...] = tok + pos_ref[...]

    x = x_ref[...]
    neg = neg_ref[...]                                                   # (BT, BT)
    hmask = hmask_ref[...]                                               # (NH, D)
    vl = vecs_ref[0]                                                     # (9, D) single load
    wqkv = wqkv_ref[0]
    wo = wo_ref[0]
    w1 = w1_ref[0]
    w2 = w2_ref[0]
    b1 = b1_ref[0]                                                       # (1, FF)

    # -- self-attention (pre-norm) --
    h = _ln(x, vl[_LN1_W:_LN1_W + 1, :], vl[_LN1_B:_LN1_B + 1, :])
    qkv = _mm(h, wqkv)                                                   # (BT, 3D) f32
    q = qkv[:, 0 * D_MODEL:1 * D_MODEL] + vl[_BQ:_BQ + 1, :]
    k = qkv[:, 1 * D_MODEL:2 * D_MODEL] + vl[_BK:_BK + 1, :]
    v = qkv[:, 2 * D_MODEL:3 * D_MODEL] + vl[_BV:_BV + 1, :]

    attn = jnp.zeros((BT, D_MODEL), jnp.float32)
    for hh in range(N_HEAD):
        hm = hmask[hh:hh + 1, :]                                         # (1, D)
        # masked lanes contribute 0 to the contraction => per-head scores
        # without narrow lane slices; output lands only in this head's lanes,
        # so the accumulation IS the concat-of-heads.
        s = lax.dot_general(q * hm, k, (((1,), (1,)), ((), ())),
                            preferred_element_type=jnp.float32)          # (BT, BT)
        s = s * SCALE + neg
        m = jnp.max(s, axis=-1, keepdims=True)
        p = jnp.exp(s - m)
        p = p * pl.reciprocal(jnp.sum(p, axis=-1, keepdims=True), approx=True)
        attn = attn + jnp.dot(p, v * hm, preferred_element_type=jnp.float32)

    # out-proj bias already carries the constant cross-attention block
    # (memory is a single all-zero token -> softmax weight 1 -> constant).
    x = x + _mm(attn, wo) + vl[_BO:_BO + 1, :]

    # -- feed-forward (pre-norm) --
    h3 = _ln(x, vl[_LN3_W:_LN3_W + 1, :], vl[_LN3_B:_LN3_B + 1, :])
    f = jnp.maximum(_mm(h3, w1) + b1, 0.0)
    x = x + _mm(f, w2) + vl[_B2:_B2 + 1, :]

    x_ref[...] = x

    # ---- last layer: final LayerNorm + tied output head (pre-transposed) ----
    @pl.when(l == pl.num_programs(0) - 1)
    def _():
        hf = _ln(x, normf_ref[0:1, :], normf_ref[1:2, :])
        out_ref[...] = jnp.dot(hf.astype(emb_t_ref.dtype), emb_t_ref[...],
                               preferred_element_type=jnp.float32)


# ------------------------------ wrapper ----------------------------------------
def _const_spec(shape):
    n = len(shape)
    return pl.BlockSpec(shape, lambda l, _n=n: (0,) * _n)


def _layer_spec(shape):
    return pl.BlockSpec((1,) + tuple(shape[1:]), lambda l: (l, 0, 0))


@jax.jit
def forward(input_ids, params):
    """input_ids: (T, B) int -> logits (T, B, VOCAB) float32."""
    Tn, Bn = input_ids.shape
    BT = Bn * Tn
    # flatten batch-major: row = b*T + t
    ids = jnp.transpose(input_ids.astype(jnp.int32), (1, 0)).reshape(BT, 1)

    # ---- hoisted constants (shape-only; constant-folded by XLA, tiny DMA) ----
    pos_rep = jnp.tile(params['pos_emb'][:Tn], (Bn, 1))                  # (BT, D)
    rows = jnp.arange(BT)
    t_idx = rows % Tn
    b_idx = rows // Tn
    allowed = (t_idx[None, :] <= t_idx[:, None]) & (b_idx[None, :] == b_idx[:, None])
    neg = jnp.where(allowed, 0.0, NEG_BIG).astype(jnp.float32)           # (BT, BT)
    lane = jnp.arange(D_MODEL)
    hmask = jnp.stack([((lane >= h * HD) & (lane < (h + 1) * HD)).astype(jnp.float32)
                       for h in range(N_HEAD)])                          # (N_HEAD, D)

    args = (ids, params['token_emb'], params['emb_T'], pos_rep, neg, hmask,
            params['vecs'], params['b1'], params['wqkv'], params['wo'],
            params['w1'], params['w2'], params['norm_f'])

    in_specs = [
        _const_spec((BT, 1)),                       # ids
        _const_spec((VOCAB, D_MODEL)),              # token_emb (f32, gather)
        _const_spec((D_MODEL, VOCAB)),              # emb_T (tied head, pre-transposed)
        _const_spec((BT, D_MODEL)),                 # pos slab
        _const_spec((BT, BT)),                      # causal mask
        _const_spec((N_HEAD, D_MODEL)),             # head lane masks
        _layer_spec((N_LAYERS, N_VECS, D_MODEL)),   # vecs      (streamed per layer)
        _layer_spec((N_LAYERS, 1, DIM_FF)),         # b1
        _layer_spec((N_LAYERS, D_MODEL, 3 * D_MODEL)),  # wqkv
        _layer_spec((N_LAYERS, D_MODEL, D_MODEL)),      # wo
        _layer_spec((N_LAYERS, D_MODEL, DIM_FF)),       # w1
        _layer_spec((N_LAYERS, DIM_FF, D_MODEL)),       # w2
        _const_spec((2, D_MODEL)),                  # final LN
    ]

    logits_flat = pl.pallas_call(
        partial(fused_forward_kernel, Tn, Bn),
        out_shape=jax.ShapeDtypeStruct((BT, VOCAB), jnp.float32),
        grid_spec=pltpu.PrefetchScalarGridSpec(
            num_scalar_prefetch=0,
            grid=(N_LAYERS,),                       # layer grid: weight DMA pipelines
            in_specs=in_specs,                      #   behind the previous layer's compute
            out_specs=pl.BlockSpec((BT, VOCAB), lambda l: (0, 0)),
            scratch_shapes=[pltpu.VMEM((BT, D_MODEL), jnp.float32)]),
        compiler_params=pltpu.CompilerParams(
            dimension_semantics=("arbitrary",)),
    )(*args)

    return jnp.transpose(logits_flat.reshape(Bn, Tn, VOCAB), (1, 0, 2))


# ---------------------------- parameter init ----------------------------------
def _xavier(key, shape):
    fan_out, fan_in = shape
    bound = math.sqrt(6.0 / (fan_in + fan_out))
    return jax.random.uniform(key, shape, jnp.float32, -bound, bound)


def init_params(key):
    keys = jax.random.split(key, 2 + N_LAYERS)
    token_emb = 0.02 * jax.random.normal(keys[0], (VOCAB, D_MODEL), jnp.float32)
    pos_emb   = 0.02 * jax.random.normal(keys[1], (MAX_LEN, D_MODEL), jnp.float32)

    vecs, b1s, wqkvs, wos, w1s, w2s = [], [], [], [], [], []
    for li in range(N_LAYERS):
        lk = jax.random.split(keys[2 + li], 6)
        in_proj        = _xavier(lk[0], (3 * D_MODEL, D_MODEL))   # self-attn in_proj
        out_proj       = _xavier(lk[1], (D_MODEL, D_MODEL))       # self-attn out_proj
        in_proj_cross  = _xavier(lk[2], (3 * D_MODEL, D_MODEL))   # cross-attn in_proj
        out_proj_cross = _xavier(lk[3], (D_MODEL, D_MODEL))       # cross-attn out_proj
        lin1           = _xavier(lk[4], (DIM_FF, D_MODEL))
        lin2           = _xavier(lk[5], (D_MODEL, DIM_FF))

        zeros_d = jnp.zeros((D_MODEL,), jnp.float32)
        ones_d  = jnp.ones((D_MODEL,), jnp.float32)
        # PyTorch zero-inits all decoder biases.
        b_in_cross_v = jnp.zeros((D_MODEL,), jnp.float32)   # cross-attn value bias
        b_out_cross  = jnp.zeros((D_MODEL,), jnp.float32)   # cross-attn out-proj bias
        # Cross-attention over a single all-zero memory token: softmax weight is
        # exactly 1, so the block adds the query-independent constant
        # ((0 @ Wv_c^T + bv_c) @ Wo_c^T + bo_c).  Fold it into the self-attn out bias
        # (parameterized on the actual cross biases, which are zero at init).
        v_cross     = jnp.zeros((D_MODEL,)) @ in_proj_cross[2 * D_MODEL:].T + b_in_cross_v
        cross_const = v_cross @ out_proj_cross.T + b_out_cross

        vecs.append(jnp.stack([
            ones_d,                    # ln1_w
            zeros_d,                   # ln1_b
            zeros_d, zeros_d, zeros_d, # bq, bk, bv   (in_proj bias init = 0)
            zeros_d + cross_const,     # bo (+ folded cross-attention constant)
            ones_d,                    # ln3_w
            zeros_d,                   # ln3_b
            zeros_d,                   # b2
        ]))
        b1s.append(jnp.zeros((1, DIM_FF), jnp.float32))
        wqkvs.append(in_proj.T)        # (D, 3D)
        wos.append(out_proj.T)         # (D, D)
        w1s.append(lin1.T)             # (D, FF)
        w2s.append(lin2.T)             # (FF, D)

    return dict(
        token_emb=token_emb,                                         # (V, D) f32
        emb_T=token_emb.T.astype(WEIGHT_DTYPE),                      # (D, V) tied head
        pos_emb=pos_emb,
        norm_f=jnp.stack([jnp.ones((D_MODEL,), jnp.float32),
                          jnp.zeros((D_MODEL,), jnp.float32)]),      # (2, D)
        vecs=jnp.stack(vecs),                                        # (L, 9, D)
        b1=jnp.stack(b1s),                                           # (L, 1, FF)
        wqkv=jnp.stack(wqkvs).astype(WEIGHT_DTYPE),                  # (L, D, 3D)
        wo=jnp.stack(wos).astype(WEIGHT_DTYPE),                      # (L, D, D)
        w1=jnp.stack(w1s).astype(WEIGHT_DTYPE),                      # (L, D, FF)
        w2=jnp.stack(w2s).astype(WEIGHT_DTYPE),                      # (L, FF, D)
    )


# ---------------------------- pure-JAX reference ------------------------------
def ref_forward(input_ids, params):
    P = lax.Precision.HIGHEST
    Tn, Bn = input_ids.shape
    emb = params['token_emb']
    tok = emb[input_ids]                                  # (T, B, D)
    pos = params['pos_emb'][:Tn][:, None, :]
    x = jnp.transpose(tok + pos, (1, 0, 2))               # (B, T, D)

    row = jnp.arange(Tn)[:, None]
    col = jnp.arange(Tn)[None, :]
    neg = jnp.where(col > row, -jnp.inf, 0.0)

    def ln(x, w, b):
        mu = x.mean(-1, keepdims=True)
        var = ((x - mu) ** 2).mean(-1, keepdims=True)
        return (x - mu) / jnp.sqrt(var + LN_EPS) * w + b

    for l in range(N_LAYERS):
        vec  = params['vecs'][l]
        wqkv = params['wqkv'][l].astype(jnp.float32)
        wo   = params['wo'][l].astype(jnp.float32)
        w1   = params['w1'][l].astype(jnp.float32)
        w2   = params['w2'][l].astype(jnp.float32)
        b1   = params['b1'][l, 0]

        h = ln(x, vec[_LN1_W], vec[_LN1_B])
        qkv = jnp.einsum('btd,de->bte', h, wqkv, precision=P)
        q = qkv[..., 0 * D_MODEL:1 * D_MODEL] + vec[_BQ]
        k = qkv[..., 1 * D_MODEL:2 * D_MODEL] + vec[_BK]
        v = qkv[..., 2 * D_MODEL:3 * D_MODEL] + vec[_BV]
        q = q.reshape(Bn, Tn, N_HEAD, HD).transpose(0, 2, 1, 3)
        k = k.reshape(Bn, Tn, N_HEAD, HD).transpose(0, 2, 1, 3)
        v = v.reshape(Bn, Tn, N_HEAD, HD).transpose(0, 2, 1, 3)
        s = jnp.einsum('bhqe,bhke->bhqk', q, k, precision=P) * SCALE + neg
        p = jax.nn.softmax(s, axis=-1)
        o = jnp.einsum('bhqk,bhke->bhqe', p, v, precision=P)
        o = o.transpose(0, 2, 1, 3).reshape(Bn, Tn, D_MODEL)
        x = x + jnp.einsum('btd,de->bte', o, wo, precision=P) + vec[_BO]
        h = ln(x, vec[_LN3_W], vec[_LN3_B])
        f = jax.nn.relu(jnp.einsum('btd,df->btf', h, w1, precision=P) + b1)
        x = x + jnp.einsum('btf,fd->btd', f, w2, precision=P) + vec[_B2]

    h = ln(x, params['norm_f'][0], params['norm_f'][1])
    logits = jnp.einsum('btd,vd->btv', h, emb, precision=P)     # tied head
    return jnp.transpose(logits, (1, 0, 2))


# --------------------------------- main ---------------------------------------
if __name__ == "__main__":
    key = jax.random.PRNGKey(0)
    pkey, ikey = jax.random.split(key)
    params = init_params(pkey)
    input_ids = jax.random.randint(ikey, (T_SEQ, B_SZ), 0, VOCAB, dtype=jnp.int32)

    logits = forward(input_ids, params)
    jax.block_until_ready(logits)

    assert logits.shape == (T_SEQ, B_SZ, VOCAB), logits.shape
    assert bool(jnp.all(jnp.isfinite(logits)))

    ref = ref_forward(input_ids, params)
    max_err = float(jnp.max(jnp.abs(logits - ref)))
    tol = 1e-2 if WEIGHT_DTYPE == jnp.float32 else 5e-2
    assert max_err < tol, f"mismatch vs reference: {max_err}"

    print("KERNEL_OK")
</pallas_src>

<mosaic_0001>
module attributes {stable_mosaic.version = 11 : i64} {
  func.func @fused_forward_kernel(%arg0: i32, %arg1: memref<16x1xi32, #tpu.memory_space<vmem>>, %arg2: memref<256x128xf32, #tpu.memory_space<vmem>>, %arg3: memref<128x256xbf16, #tpu.memory_space<vmem>>, %arg4: memref<16x128xf32, #tpu.memory_space<vmem>>, %arg5: memref<16x16xf32, #tpu.memory_space<vmem>>, %arg6: memref<2x128xf32, #tpu.memory_space<vmem>>, %arg7: memref<1x9x128xf32, #tpu.memory_space<vmem>>, %arg8: memref<1x1x256xf32, #tpu.memory_space<vmem>>, %arg9: memref<1x128x384xbf16, #tpu.memory_space<vmem>>, %arg10: memref<1x128x128xbf16, #tpu.memory_space<vmem>>, %arg11: memref<1x128x256xbf16, #tpu.memory_space<vmem>>, %arg12: memref<1x256x128xbf16, #tpu.memory_space<vmem>>, %arg13: memref<2x128xf32, #tpu.memory_space<vmem>>, %arg14: memref<16x256xf32, #tpu.memory_space<vmem>>, %arg15: memref<16x128xf32, #tpu.memory_space<vmem>>) attributes {dimension_semantics = [#tpu.dimension_semantics<arbitrary>], iteration_bounds = array<i64: 3>, scalar_prefetch = 0 : i64, scratch_operands = 1 : i64, tpu.core_type = #tpu.core_type<tc>, window_params = [{pipeline_mode = #tpu.pipeline_mode<synchronous>, transform_indices = @transform_0, window_bounds = array<i64: 16, 1>}, {pipeline_mode = #tpu.pipeline_mode<synchronous>, transform_indices = @transform_1, window_bounds = array<i64: 256, 128>}, {pipeline_mode = #tpu.pipeline_mode<synchronous>, transform_indices = @transform_2, window_bounds = array<i64: 128, 256>}, {pipeline_mode = #tpu.pipeline_mode<synchronous>, transform_indices = @transform_3, window_bounds = array<i64: 16, 128>}, {pipeline_mode = #tpu.pipeline_mode<synchronous>, transform_indices = @transform_4, window_bounds = array<i64: 16, 16>}, {pipeline_mode = #tpu.pipeline_mode<synchronous>, transform_indices = @transform_5, window_bounds = array<i64: 2, 128>}, {transform_indices = @transform_6, window_bounds = array<i64: 1, 9, 128>}, {transform_indices = @transform_7, window_bounds = array<i64: 1, 1, 256>}, {transform_indices = @transform_8, window_bounds = array<i64: 1, 128, 384>}, {transform_indices = @transform_9, window_bounds = array<i64: 1, 128, 128>}, {transform_indices = @transform_10, window_bounds = array<i64: 1, 128, 256>}, {transform_indices = @transform_11, window_bounds = array<i64: 1, 256, 128>}, {pipeline_mode = #tpu.pipeline_mode<synchronous>, transform_indices = @transform_12, window_bounds = array<i64: 2, 128>}, {pipeline_mode = #tpu.pipeline_mode<synchronous>, transform_indices = @transform_13, window_bounds = array<i64: 16, 256>}]} {
    %c0_i32 = arith.constant 0 : i32
    %0 = arith.cmpi eq, %arg0, %c0_i32 : i32
    %1 = arith.extui %0 : i1 to i32
    %c0_i32_0 = arith.constant 0 : i32
    %2 = arith.cmpi ne, %1, %c0_i32_0 : i32
    scf.if %2 {
      %c0_52 = arith.constant 0 : index
      %c0_53 = arith.constant 0 : index
      %145 = vector.load %arg1[%c0_52, %c0_53] : memref<16x1xi32, #tpu.memory_space<vmem>>, vector<16x1xi32>
      %146 = tpu.iota {dimensions = array<i32: 1>} : vector<16x256xi32>
      %147 = vector.broadcast %145 : vector<16x1xi32> to vector<16x256xi32>
      %148 = arith.cmpi eq, %147, %146 : vector<16x256xi32>
      %149 = arith.extui %148 : vector<16x256xi1> to vector<16x256xi32>
      %150 = arith.sitofp %149 : vector<16x256xi32> to vector<16x256xf32>
      %c0_54 = arith.constant 0 : index
      %c0_55 = arith.constant 0 : index
      %151 = vector.load %arg2[%c0_54, %c0_55] : memref<256x128xf32, #tpu.memory_space<vmem>>, vector<256x128xf32>
      %cst_56 = arith.constant dense<0.000000e+00> : vector<16x128xf32>
      %152 = tpu.matmul %150, %151, %cst_56 {dimension_numbers = #tpu.dot_dimension_numbers<[1], [0], [0], [1], [0, 0, 1, 1], [], []>} : vector<16x256xf32>, vector<256x128xf32>, vector<16x128xf32> -> vector<16x128xf32>
      %c0_57 = arith.constant 0 : index
      %c0_58 = arith.constant 0 : index
      %153 = vector.load %arg4[%c0_57, %c0_58] : memref<16x128xf32, #tpu.memory_space<vmem>>, vector<16x128xf32>
      %154 = arith.addf %152, %153 : vector<16x128xf32>
      %c0_59 = arith.constant 0 : index
      %c0_60 = arith.constant 0 : index
      %155 = vector.load %arg15[%c0_59, %c0_60] : memref<16x128xf32, #tpu.memory_space<vmem>>, vector<16x128xf32>
      tpu.vector_store %arg15[%c0_59, %c0_60], %154 {strides = array<i32>} : memref<16x128xf32, #tpu.memory_space<vmem>>, vector<16x128xf32>,
    } else {
    }
    %c0 = arith.constant 0 : index
    %c0_1 = arith.constant 0 : index
    %3 = vector.load %arg15[%c0, %c0_1] : memref<16x128xf32, #tpu.memory_space<vmem>>, vector<16x128xf32>
    %c0_2 = arith.constant 0 : index
    %c0_3 = arith.constant 0 : index
    %4 = vector.load %arg5[%c0_2, %c0_3] : memref<16x16xf32, #tpu.memory_space<vmem>>, vector<16x16xf32>
    %c0_4 = arith.constant 0 : index
    %c0_5 = arith.constant 0 : index
    %5 = vector.load %arg6[%c0_4, %c0_5] : memref<2x128xf32, #tpu.memory_space<vmem>>, vector<2x128xf32>
    %c0_6 = arith.constant 0 : index
    %c0_7 = arith.constant 0 : index
    %c0_8 = arith.constant 0 : index
    %6 = vector.load %arg7[%c0_6, %c0_7, %c0_8] : memref<1x9x128xf32, #tpu.memory_space<vmem>>, vector<1x9x128xf32>
    %7 = vector.shape_cast %6 : vector<1x9x128xf32> to vector<9x128xf32>
    %c0_9 = arith.constant 0 : index
    %c0_10 = arith.constant 0 : index
    %c0_11 = arith.constant 0 : index
    %8 = vector.load %arg9[%c0_9, %c0_10, %c0_11] : memref<1x128x384xbf16, #tpu.memory_space<vmem>>, vector<1x128x384xbf16>
    %9 = vector.shape_cast %8 : vector<1x128x384xbf16> to vector<128x384xbf16>
    %c0_12 = arith.constant 0 : index
    %c0_13 = arith.constant 0 : index
    %c0_14 = arith.constant 0 : index
    %10 = vector.load %arg10[%c0_12, %c0_13, %c0_14] : memref<1x128x128xbf16, #tpu.memory_space<vmem>>, vector<1x128x128xbf16>
    %11 = vector.shape_cast %10 : vector<1x128x128xbf16> to vector<128x128xbf16>
    %c0_15 = arith.constant 0 : index
    %c0_16 = arith.constant 0 : index
    %c0_17 = arith.constant 0 : index
    %12 = vector.load %arg11[%c0_15, %c0_16, %c0_17] : memref<1x128x256xbf16, #tpu.memory_space<vmem>>, vector<1x128x256xbf16>
    %13 = vector.shape_cast %12 : vector<1x128x256xbf16> to vector<128x256xbf16>
    %c0_18 = arith.constant 0 : index
    %c0_19 = arith.constant 0 : index
    %c0_20 = arith.constant 0 : index
    %14 = vector.load %arg12[%c0_18, %c0_19, %c0_20] : memref<1x256x128xbf16, #tpu.memory_space<vmem>>, vector<1x256x128xbf16>
    %15 = vector.shape_cast %14 : vector<1x256x128xbf16> to vector<256x128xbf16>
    %c0_21 = arith.constant 0 : index
    %c0_22 = arith.constant 0 : index
    %c0_23 = arith.constant 0 : index
    %16 = vector.load %arg8[%c0_21, %c0_22, %c0_23] : memref<1x1x256xf32, #tpu.memory_space<vmem>>, vector<1x1x256xf32>
    %17 = vector.shape_cast %16 : vector<1x1x256xf32> to vector<1x256xf32>
    %18 = vector.extract_strided_slice %7 {offsets = [0, 0], sizes = [1, 128], strides = [1, 1]} : vector<9x128xf32> to vector<1x128xf32>
    %19 = vector.extract_strided_slice %7 {offsets = [1, 0], sizes = [1, 128], strides = [1, 1]} : vector<9x128xf32> to vector<1x128xf32>
    %cst = arith.constant dense<0.000000e+00> : vector<16xf32>
    %20 = vector.multi_reduction <add>, %3, %cst [1] : vector<16x128xf32> to vector<16xf32>
    %21 = vector.shape_cast %20 : vector<16xf32> to vector<16x1xf32>
    %cst_24 = arith.constant 1.280000e+02 : f32
    %22 = vector.broadcast %cst_24 : f32 to vector<16x1xf32>
    %23 = arith.divf %21, %22 : vector<16x1xf32>
    %24 = vector.broadcast %23 : vector<16x1xf32> to vector<16x128xf32>
    %25 = arith.subf %3, %24 : vector<16x128xf32>
    %26 = arith.mulf %25, %25 : vector<16x128xf32>
    %cst_25 = arith.constant dense<0.000000e+00> : vector<16xf32>
    %27 = vector.multi_reduction <add>, %26, %cst_25 [1] : vector<16x128xf32> to vector<16xf32>
    %28 = vector.shape_cast %27 : vector<16xf32> to vector<16x1xf32>
    %cst_26 = arith.constant 1.280000e+02 : f32
    %29 = vector.broadcast %cst_26 : f32 to vector<16x1xf32>
    %30 = arith.divf %28, %29 : vector<16x1xf32>
    %31 = vector.broadcast %23 : vector<16x1xf32> to vector<16x128xf32>
    %32 = arith.subf %3, %31 : vector<16x128xf32>
    %cst_27 = arith.constant 9.99999974E-6 : f32
    %33 = vector.broadcast %cst_27 : f32 to vector<16x1xf32>
    %34 = arith.addf %30, %33 : vector<16x1xf32>
    %35 = math.rsqrt %34 : vector<16x1xf32>
    %36 = vector.broadcast %35 : vector<16x1xf32> to vector<16x128xf32>
    %37 = arith.mulf %32, %36 : vector<16x128xf32>
    %38 = vector.broadcast %18 : vector<1x128xf32> to vector<16x128xf32>
    %39 = arith.mulf %37, %38 : vector<16x128xf32>
    %40 = vector.broadcast %19 : vector<1x128xf32> to vector<16x128xf32>
    %41 = arith.addf %39, %40 : vector<16x128xf32>
    %42 = arith.truncf %41 : vector<16x128xf32> to vector<16x128xbf16>
    %cst_28 = arith.constant dense<0.000000e+00> : vector<16x384xf32>
    %43 = tpu.matmul %42, %9, %cst_28 {dimension_numbers = #tpu.dot_dimension_numbers<[1], [0], [0], [1], [0, 0, 1, 1], [], []>} : vector<16x128xbf16>, vector<128x384xbf16>, vector<16x384xf32> -> vector<16x384xf32>
    %44 = vector.extract_strided_slice %43 {offsets = [0, 0], sizes = [16, 128], strides = [1, 1]} : vector<16x384xf32> to vector<16x128xf32>
    %45 = vector.extract_strided_slice %7 {offsets = [2, 0], sizes = [1, 128], strides = [1, 1]} : vector<9x128xf32> to vector<1x128xf32>
    %46 = vector.broadcast %45 : vector<1x128xf32> to vector<16x128xf32>
    %47 = arith.addf %44, %46 : vector<16x128xf32>
    %48 = vector.extract_strided_slice %43 {offsets = [0, 128], sizes = [16, 128], strides = [1, 1]} : vector<16x384xf32> to vector<16x128xf32>
    %49 = vector.extract_strided_slice %7 {offsets = [3, 0], sizes = [1, 128], strides = [1, 1]} : vector<9x128xf32> to vector<1x128xf32>
    %50 = vector.broadcast %49 : vector<1x128xf32> to vector<16x128xf32>
    %51 = arith.addf %48, %50 : vector<16x128xf32>
    %52 = vector.extract_strided_slice %43 {offsets = [0, 256], sizes = [16, 128], strides = [1, 1]} : vector<16x384xf32> to vector<16x128xf32>
    %53 = vector.extract_strided_slice %7 {offsets = [4, 0], sizes = [1, 128], strides = [1, 1]} : vector<9x128xf32> to vector<1x128xf32>
    %54 = vector.broadcast %53 : vector<1x128xf32> to vector<16x128xf32>
    %55 = arith.addf %52, %54 : vector<16x128xf32>
    %cst_29 = arith.constant 0.000000e+00 : f32
    %56 = vector.broadcast %cst_29 : f32 to vector<16x128xf32>
    %57 = vector.extract_strided_slice %5 {offsets = [0, 0], sizes = [1, 128], strides = [1, 1]} : vector<2x128xf32> to vector<1x128xf32>
    %58 = vector.broadcast %57 : vector<1x128xf32> to vector<16x128xf32>
    %59 = arith.mulf %47, %58 : vector<16x128xf32>
    %cst_30 = arith.constant dense<0.000000e+00> : vector<16x16xf32>
    %60 = tpu.matmul %59, %51, %cst_30 {dimension_numbers = #tpu.dot_dimension_numbers<[1], [1], [0], [0], [0, 0, 1, 0], [], []>} : vector<16x128xf32>, vector<16x128xf32>, vector<16x16xf32> -> vector<16x16xf32>
    %cst_31 = arith.constant 1.250000e-01 : f32
    %61 = vector.broadcast %cst_31 : f32 to vector<16x16xf32>
    %62 = arith.mulf %60, %61 : vector<16x16xf32>
    %63 = arith.addf %62, %4 : vector<16x16xf32>
    %cst_32 = arith.constant dense<0xFF800000> : vector<16xf32>
    %64 = vector.multi_reduction <maximumf>, %63, %cst_32 [1] : vector<16x16xf32> to vector<16xf32>
    %65 = vector.shape_cast %64 : vector<16xf32> to vector<16x1xf32>
    %66 = vector.broadcast %65 : vector<16x1xf32> to vector<16x16xf32>
    %67 = arith.subf %63, %66 : vector<16x16xf32>
    %68 = math.exp %67 : vector<16x16xf32>
    %cst_33 = arith.constant dense<0.000000e+00> : vector<16xf32>
    %69 = vector.multi_reduction <add>, %68, %cst_33 [1] : vector<16x16xf32> to vector<16xf32>
    %70 = vector.shape_cast %69 : vector<16xf32> to vector<16x1xf32>
    %71 = tpu.reciprocal %70 {approx = true} : vector<16x1xf32> -> vector<16x1xf32>
    %72 = vector.broadcast %71 : vector<16x1xf32> to vector<16x16xf32>
    %73 = arith.mulf %68, %72 : vector<16x16xf32>
    %74 = vector.broadcast %57 : vector<1x128xf32> to vector<16x128xf32>
    %75 = arith.mulf %55, %74 : vector<16x128xf32>
    %cst_34 = arith.constant dense<0.000000e+00> : vector<16x128xf32>
    %76 = tpu.matmul %73, %75, %cst_34 {dimension_numbers = #tpu.dot_dimension_numbers<[1], [0], [0], [1], [0, 0, 1, 1], [], []>} : vector<16x16xf32>, vector<16x128xf32>, vector<16x128xf32> -> vector<16x128xf32>
    %77 = arith.addf %56, %76 : vector<16x128xf32>
    %78 = vector.extract_strided_slice %5 {offsets = [1, 0], sizes = [1, 128], strides = [1, 1]} : vector<2x128xf32> to vector<1x128xf32>
    %79 = vector.broadcast %78 : vector<1x128xf32> to vector<16x128xf32>
    %80 = arith.mulf %47, %79 : vector<16x128xf32>
    %cst_35 = arith.constant dense<0.000000e+00> : vector<16x16xf32>
    %81 = tpu.matmul %80, %51, %cst_35 {dimension_numbers = #tpu.dot_dimension_numbers<[1], [1], [0], [0], [0, 0, 1, 0], [], []>} : vector<16x128xf32>, vector<16x128xf32>, vector<16x16xf32> -> vector<16x16xf32>
    %cst_36 = arith.constant 1.250000e-01 : f32
    %82 = vector.broadcast %cst_36 : f32 to vector<16x16xf32>
    %83 = arith.mulf %81, %82 : vector<16x16xf32>
    %84 = arith.addf %83, %4 : vector<16x16xf32>
    %cst_37 = arith.constant dense<0xFF800000> : vector<16xf32>
    %85 = vector.multi_reduction <maximumf>, %84, %cst_37 [1] : vector<16x16xf32> to vector<16xf32>
    %86 = vector.shape_cast %85 : vector<16xf32> to vector<16x1xf32>
    %87 = vector.broadcast %86 : vector<16x1xf32> to vector<16x16xf32>
    %88 = arith.subf %84, %87 : vector<16x16xf32>
    %89 = math.exp %88 : vector<16x16xf32>
    %cst_38 = arith.constant dense<0.000000e+00> : vector<16xf32>
    %90 = vector.multi_reduction <add>, %89, %cst_38 [1] : vector<16x16xf32> to vector<16xf32>
    %91 = vector.shape_cast %90 : vector<16xf32> to vector<16x1xf32>
    %92 = tpu.reciprocal %91 {approx = true} : vector<16x1xf32> -> vector<16x1xf32>
    %93 = vector.broadcast %92 : vector<16x1xf32> to vector<16x16xf32>
    %94 = arith.mulf %89, %93 : vector<16x16xf32>
    %95 = vector.broadcast %78 : vector<1x128xf32> to vector<16x128xf32>
    %96 = arith.mulf %55, %95 : vector<16x128xf32>
    %cst_39 = arith.constant dense<0.000000e+00> : vector<16x128xf32>
    %97 = tpu.matmul %94, %96, %cst_39 {dimension_numbers = #tpu.dot_dimension_numbers<[1], [0], [0], [1], [0, 0, 1, 1], [], []>} : vector<16x16xf32>, vector<16x128xf32>, vector<16x128xf32> -> vector<16x128xf32>
    %98 = arith.addf %77, %97 : vector<16x128xf32>
    %99 = arith.truncf %98 : vector<16x128xf32> to vector<16x128xbf16>
    %cst_40 = arith.constant dense<0.000000e+00> : vector<16x128xf32>
    %100 = tpu.matmul %99, %11, %cst_40 {dimension_numbers = #tpu.dot_dimension_numbers<[1], [0], [0], [1], [0, 0, 1, 1], [], []>} : vector<16x128xbf16>, vector<128x128xbf16>, vector<16x128xf32> -> vector<16x128xf32>
    %101 = arith.addf %3, %100 : vector<16x128xf32>
    %102 = vector.extract_strided_slice %7 {offsets = [5, 0], sizes = [1, 128], strides = [1, 1]} : vector<9x128xf32> to vector<1x128xf32>
    %103 = vector.broadcast %102 : vector<1x128xf32> to vector<16x128xf32>
    %104 = arith.addf %101, %103 : vector<16x128xf32>
    %105 = vector.extract_strided_slice %7 {offsets = [6, 0], sizes = [1, 128], strides = [1, 1]} : vector<9x128xf32> to vector<1x128xf32>
    %106 = vector.extract_strided_slice %7 {offsets = [7, 0], sizes = [1, 128], strides = [1, 1]} : vector<9x128xf32> to vector<1x128xf32>
    %cst_41 = arith.constant dense<0.000000e+00> : vector<16xf32>
    %107 = vector.multi_reduction <add>, %104, %cst_41 [1] : vector<16x128xf32> to vector<16xf32>
    %108 = vector.shape_cast %107 : vector<16xf32> to vector<16x1xf32>
    %cst_42 = arith.constant 1.280000e+02 : f32
    %109 = vector.broadcast %cst_42 : f32 to vector<16x1xf32>
    %110 = arith.divf %108, %109 : vector<16x1xf32>
    %111 = vector.broadcast %110 : vector<16x1xf32> to vector<16x128xf32>
    %112 = arith.subf %104, %111 : vector<16x128xf32>
    %113 = arith.mulf %112, %112 : vector<16x128xf32>
    %cst_43 = arith.constant dense<0.000000e+00> : vector<16xf32>
    %114 = vector.multi_reduction <add>, %113, %cst_43 [1] : vector<16x128xf32> to vector<16xf32>
    %115 = vector.shape_cast %114 : vector<16xf32> to vector<16x1xf32>
    %cst_44 = arith.constant 1.280000e+02 : f32
    %116 = vector.broadcast %cst_44 : f32 to vector<16x1xf32>
    %117 = arith.divf %115, %116 : vector<16x1xf32>
    %118 = vector.broadcast %110 : vector<16x1xf32> to vector<16x128xf32>
    %119 = arith.subf %104, %118 : vector<16x128xf32>
    %cst_45 = arith.constant 9.99999974E-6 : f32
    %120 = vector.broadcast %cst_45 : f32 to vector<16x1xf32>
    %121 = arith.addf %117, %120 : vector<16x1xf32>
    %122 = math.rsqrt %121 : vector<16x1xf32>
    %123 = vector.broadcast %122 : vector<16x1xf32> to vector<16x128xf32>
    %124 = arith.mulf %119, %123 : vector<16x128xf32>
    %125 = vector.broadcast %105 : vector<1x128xf32> to vector<16x128xf32>
    %126 = arith.mulf %124, %125 : vector<16x128xf32>
    %127 = vector.broadcast %106 : vector<1x128xf32> to vector<16x128xf32>
    %128 = arith.addf %126, %127 : vector<16x128xf32>
    %129 = arith.truncf %128 : vector<16x128xf32> to vector<16x128xbf16>
    %cst_46 = arith.constant dense<0.000000e+00> : vector<16x256xf32>
    %130 = tpu.matmul %129, %13, %cst_46 {dimension_numbers = #tpu.dot_dimension_numbers<[1], [0], [0], [1], [0, 0, 1, 1], [], []>} : vector<16x128xbf16>, vector<128x256xbf16>, vector<16x256xf32> -> vector<16x256xf32>
    %131 = vector.broadcast %17 : vector<1x256xf32> to vector<16x256xf32>
    %132 = arith.addf %130, %131 : vector<16x256xf32>
    %cst_47 = arith.constant 0.000000e+00 : f32
    %133 = vector.broadcast %cst_47 : f32 to vector<16x256xf32>
    %134 = arith.maximumf %132, %133 : vector<16x256xf32>
    %135 = arith.truncf %134 : vector<16x256xf32> to vector<16x256xbf16>
    %cst_48 = arith.constant dense<0.000000e+00> : vector<16x128xf32>
    %136 = tpu.matmul %135, %15, %cst_48 {dimension_numbers = #tpu.dot_dimension_numbers<[1], [0], [0], [1], [0, 0, 1, 1], [], []>} : vector<16x256xbf16>, vector<256x128xbf16>, vector<16x128xf32> -> vector<16x128xf32>
    %137 = arith.addf %104, %136 : vector<16x128xf32>
    %138 = vector.extract_strided_slice %7 {offsets = [8, 0], sizes = [1, 128], strides = [1, 1]} : vector<9x128xf32> to vector<1x128xf32>
    %139 = vector.broadcast %138 : vector<1x128xf32> to vector<16x128xf32>
    %140 = arith.addf %137, %139 : vector<16x128xf32>
    %c0_49 = arith.constant 0 : index
    %c0_50 = arith.constant 0 : index
    %141 = vector.load %arg15[%c0_49, %c0_50] : memref<16x128xf32, #tpu.memory_space<vmem>>, vector<16x128xf32>
    tpu.vector_store %arg15[%c0_49, %c0_50], %140 {strides = array<i32>} : memref<16x128xf32, #tpu.memory_space<vmem>>, vector<16x128xf32>,
    %c2_i32 = arith.constant 2 : i32
    %142 = arith.cmpi eq, %arg0, %c2_i32 : i32
    %143 = arith.extui %142 : i1 to i32
    %c0_i32_51 = arith.constant 0 : i32
    %144 = arith.cmpi ne, %143, %c0_i32_51 : i32
    scf.if %144 {
      %c0_52 = arith.constant 0 : index
      %c0_53 = arith.constant 0 : index
      %145 = vector.load %arg13[%c0_52, %c0_53] : memref<2x128xf32, #tpu.memory_space<vmem>>, vector<1x128xf32>
      %c1 = arith.constant 1 : index
      %c0_54 = arith.constant 0 : index
      %146 = vector.load %arg13[%c1, %c0_54] : memref<2x128xf32, #tpu.memory_space<vmem>>, vector<1x128xf32>
      %cst_55 = arith.constant dense<0.000000e+00> : vector<16xf32>
      %147 = vector.multi_reduction <add>, %140, %cst_55 [1] : vector<16x128xf32> to vector<16xf32>
      %148 = vector.shape_cast %147 : vector<16xf32> to vector<16x1xf32>
      %cst_56 = arith.constant 1.280000e+02 : f32
      %149 = vector.broadcast %cst_56 : f32 to vector<16x1xf32>
      %150 = arith.divf %148, %149 : vector<16x1xf32>
      %151 = vector.broadcast %150 : vector<16x1xf32> to vector<16x128xf32>
      %152 = arith.subf %140, %151 : vector<16x128xf32>
      %153 = arith.mulf %152, %152 : vector<16x128xf32>
      %cst_57 = arith.constant dense<0.000000e+00> : vector<16xf32>
      %154 = vector.multi_reduction <add>, %153, %cst_57 [1] : vector<16x128xf32> to vector<16xf32>
      %155 = vector.shape_cast %154 : vector<16xf32> to vector<16x1xf32>
      %cst_58 = arith.constant 1.280000e+02 : f32
      %156 = vector.broadcast %cst_58 : f32 to vector<16x1xf32>
      %157 = arith.divf %155, %156 : vector<16x1xf32>
      %158 = vector.broadcast %150 : vector<16x1xf32> to vector<16x128xf32>
      %159 = arith.subf %140, %158 : vector<16x128xf32>
      %cst_59 = arith.constant 9.99999974E-6 : f32
      %160 = vector.broadcast %cst_59 : f32 to vector<16x1xf32>
      %161 = arith.addf %157, %160 : vector<16x1xf32>
      %162 = math.rsqrt %161 : vector<16x1xf32>
      %163 = vector.broadcast %162 : vector<16x1xf32> to vector<16x128xf32>
      %164 = arith.mulf %159, %163 : vector<16x128xf32>
      %165 = vector.broadcast %145 : vector<1x128xf32> to vector<16x128xf32>
      %166 = arith.mulf %164, %165 : vector<16x128xf32>
      %167 = vector.broadcast %146 : vector<1x128xf32> to vector<16x128xf32>
      %168 = arith.addf %166, %167 : vector<16x128xf32>
      %169 = arith.truncf %168 : vector<16x128xf32> to vector<16x128xbf16>
      %c0_60 = arith.constant 0 : index
      %c0_61 = arith.constant 0 : index
      %170 = vector.load %arg3[%c0_60, %c0_61] : memref<128x256xbf16, #tpu.memory_space<vmem>>, vector<128x256xbf16>
      %cst_62 = arith.constant dense<0.000000e+00> : vector<16x256xf32>
      %171 = tpu.matmul %169, %170, %cst_62 {dimension_numbers = #tpu.dot_dimension_numbers<[1], [0], [0], [1], [0, 0, 1, 1], [], []>} : vector<16x128xbf16>, vector<128x256xbf16>, vector<16x256xf32> -> vector<16x256xf32>
      %c0_63 = arith.constant 0 : index
      %c0_64 = arith.constant 0 : index
      %172 = vector.load %arg14[%c0_63, %c0_64] : memref<16x256xf32, #tpu.memory_space<vmem>>, vector<16x256xf32>
      tpu.vector_store %arg14[%c0_63, %c0_64], %171 {strides = array<i32>} : memref<16x256xf32, #tpu.memory_space<vmem>>, vector<16x256xf32>,
    } else {
    }
    return
  }
  func.func @transform_0(%arg0: i32) -> (i32, i32) {
    %c0_i32 = arith.constant 0 : i32
    %c0_i32_0 = arith.constant 0 : i32
    %c0_i32_1 = arith.constant 0 : i32
    return %c0_i32, %c0_i32_0 : i32, i32
  }
  func.func @transform_1(%arg0: i32) -> (i32, i32) {
    %c0_i32 = arith.constant 0 : i32
    %c0_i32_0 = arith.constant 0 : i32
    %c0_i32_1 = arith.constant 0 : i32
    return %c0_i32, %c0_i32_0 : i32, i32
  }
  func.func @transform_2(%arg0: i32) -> (i32, i32) {
    %c0_i32 = arith.constant 0 : i32
    %c0_i32_0 = arith.constant 0 : i32
    %c0_i32_1 = arith.constant 0 : i32
    return %c0_i32, %c0_i32_0 : i32, i32
  }
  func.func @transform_3(%arg0: i32) -> (i32, i32) {
    %c0_i32 = arith.constant 0 : i32
    %c0_i32_0 = arith.constant 0 : i32
    %c0_i32_1 = arith.constant 0 : i32
    return %c0_i32, %c0_i32_0 : i32, i32
  }
  func.func @transform_4(%arg0: i32) -> (i32, i32) {
    %c0_i32 = arith.constant 0 : i32
    %c0_i32_0 = arith.constant 0 : i32
    %c0_i32_1 = arith.constant 0 : i32
    return %c0_i32, %c0_i32_0 : i32, i32
  }
  func.func @transform_5(%arg0: i32) -> (i32, i32) {
    %c0_i32 = arith.constant 0 : i32
    %c0_i32_0 = arith.constant 0 : i32
    %c0_i32_1 = arith.constant 0 : i32
    return %c0_i32, %c0_i32_0 : i32, i32
  }
  func.func @transform_6(%arg0: i32) -> (i32, i32, i32) {
    %c0_i32 = arith.constant 0 : i32
    %c0_i32_0 = arith.constant 0 : i32
    %c0_i32_1 = arith.constant 0 : i32
    return %arg0, %c0_i32, %c0_i32_0 : i32, i32, i32
  }
  func.func @transform_7(%arg0: i32) -> (i32, i32, i32) {
    %c0_i32 = arith.constant 0 : i32
    %c0_i32_0 = arith.constant 0 : i32
    %c0_i32_1 = arith.constant 0 : i32
    return %arg0, %c0_i32, %c0_i32_0 : i32, i32, i32
  }
  func.func @transform_8(%arg0: i32) -> (i32, i32, i32) {
    %c0_i32 = arith.constant 0 : i32
    %c0_i32_0 = arith.constant 0 : i32
    %c0_i32_1 = arith.constant 0 : i32
    return %arg0, %c0_i32, %c0_i32_0 : i32, i32, i32
  }
  func.func @transform_9(%arg0: i32) -> (i32, i32, i32) {
    %c0_i32 = arith.constant 0 : i32
    %c0_i32_0 = arith.constant 0 : i32
    %c0_i32_1 = arith.constant 0 : i32
    return %arg0, %c0_i32, %c0_i32_0 : i32, i32, i32
  }
  func.func @transform_10(%arg0: i32) -> (i32, i32, i32) {
    %c0_i32 = arith.constant 0 : i32
    %c0_i32_0 = arith.constant 0 : i32
    %c0_i32_1 = arith.constant 0 : i32
    return %arg0, %c0_i32, %c0_i32_0 : i32, i32, i32
  }
  func.func @transform_11(%arg0: i32) -> (i32, i32, i32) {
    %c0_i32 = arith.constant 0 : i32
    %c0_i32_0 = arith.constant 0 : i32
    %c0_i32_1 = arith.constant 0 : i32
    return %arg0, %c0_i32, %c0_i32_0 : i32, i32, i32
  }
  func.func @transform_12(%arg0: i32) -> (i32, i32) {
    %c0_i32 = arith.constant 0 : i32
    %c0_i32_0 = arith.constant 0 : i32
    %c0_i32_1 = arith.constant 0 : i32
    return %c0_i32, %c0_i32_0 : i32, i32
  }
  func.func @transform_13(%arg0: i32) -> (i32, i32) {
    %c0_i32 = arith.constant 0 : i32
    %c0_i32_0 = arith.constant 0 : i32
    %c0_i32_1 = arith.constant 0 : i32
    return %c0_i32, %c0_i32_0 : i32, i32
  }
}

</mosaic_0001>

<llo_original>
// kernel: forward.1
$region0: #{forward.1}
  #allocation0 [shape = 'u32[]', space=smem, size = 0x4, offset = 0x4, fixed_abs, tag = 'smem constant byte address 0x4 - core index']
  #allocation1 [shape = 'u32[72,128]{1,0:T(1,128)}', space=vmem, size = 0x9000, scoped, tag = 'internal scratch']
  #allocation2 [shape = 'f32[16,128]{1,0:T(8,128)}', space=vmem, size = 0x2000, scoped, tag = 'scratch operand']
  %s0 = inlined_call_operand.vmem [shape: s32[16,1], index: 0, kind: input, shape index: {}]
  %s1 = inlined_call_operand.hbm [shape: f32[256,128], index: 1, kind: input, shape index: {}]
  %s2 = inlined_call_operand.hbm [shape: bf16[128,256], index: 2, kind: input, shape index: {}]
  %s3 = inlined_call_operand.vmem [shape: f32[16,128], index: 3, kind: input, shape index: {}]
  %s4 = inlined_call_operand.vmem [shape: f32[16,16], index: 4, kind: input, shape index: {}]
  %s5 = inlined_call_operand.vmem [shape: f32[2,128], index: 5, kind: input, shape index: {}]
  %s6 = inlined_call_operand.vmem [shape: f32[3,9,128], index: 6, kind: input, shape index: {}]
  %s7 = inlined_call_operand.vmem [shape: f32[3,1,256], index: 7, kind: input, shape index: {}]
  %s8 = inlined_call_operand.hbm [shape: bf16[3,128,384], index: 8, kind: input, shape index: {}]
  %s9 = inlined_call_operand.hbm [shape: bf16[3,128,128], index: 9, kind: input, shape index: {}]
  %s10 = inlined_call_operand.hbm [shape: bf16[3,128,256], index: 10, kind: input, shape index: {}]
  %s11 = inlined_call_operand.hbm [shape: bf16[3,256,128], index: 11, kind: input, shape index: {}]
  %s12 = inlined_call_operand.vmem [shape: f32[2,128], index: 12, kind: input, shape index: {}]
  %s13 = inlined_call_operand.vmem [shape: f32[16,256], index: 13, kind: output, shape index: {}]
  %s14 = sld [smem:[#allocation0]]
  $region117: #{forward.1} parent=0
    _
  %s16 = ssub.s32 1, %s14
  %s17 = scalar_select 0, %s16, %s14
  $region1: #{forward.1} parent=0
    #allocation3 [shape = 'u8[131072]{0}', space=vmem, size = 0x20000, scoped, tag = 'input window, operand 1, single buffered']
    #allocation4 [shape = 's32[2]{0}', space=sflag, size = 0x8, scoped, tag = 'scoped memory for forward.1']
    #allocation5 [shape = 'u8[65536]{0}', space=vmem, size = 0x10000, scoped, tag = 'input window, operand 2, single buffered']
    #allocation6 [shape = 's32[1]{0}', space=sflag, size = 0x4, scoped, tag = 'scoped memory for forward.1']
    #allocation7 [shape = 'u8[196608]{0}', space=vmem, size = 0x30000, scoped, tag = 'input window, operand 8']
    #allocation8 [shape = 'u8[65536]{0}', space=vmem, size = 0x10000, scoped, tag = 'input window, operand 9']
    #allocation9 [shape = 'u8[131072]{0}', space=vmem, size = 0x20000, scoped, tag = 'input window, operand 10']
    #allocation10 [shape = 'u8[131072]{0}', space=vmem, size = 0x20000, scoped, tag = 'input window, operand 11']
    %18 = vsyncpa [#allocation4], 0
    %19 = vsyncpa [#allocation6], 0
    loop: start=0, step=1, limit=5
    $region2: #{forward.1} parent=1 // loop_pre_header
      _
    $region3: #{forward.1} parent=1 // loop_header
      %s21 = sphi 0, %s25
      %p22 = scmp.ge.s32.totalorder %s21, 5
      %s29 = sphi 0, %s29
      %s31 = sphi 0, %s29
      %s32 = sphi 0, %s31
      %s46 = sphi 0, %s32
      %s50 = sphi 0, %s50
      %s52 = sphi 0, %s50
      %s53 = sphi 0, %s52
      %s67 = sphi 0, %s53
      %s71 = sphi 0, %s71
      %s73 = sphi 0, %s71
      %s74 = sphi 0, %s73
      %s88 = sphi 0, %s74
      %s92 = sphi 0, %s92
      %s94 = sphi 0, %s92
      %s95 = sphi 0, %s94
      %s109 = sphi 0, %s95
      %s113 = sphi 0, %s113
      %s115 = sphi 0, %s113
      %s116 = sphi 0, %s115
      %s130 = sphi 0, %s116
      %s134 = sphi 0, %s134
      %s136 = sphi 0, %s134
      %s137 = sphi 0, %s136
      %s151 = sphi 0, %s137
      %s157 = sphi 0, %s159
      %s160 = sphi 0, %s157
      %s161 = sphi 0, %s160
      %s177 = sphi 0, %s161
      %s183 = sphi 0, %s185
      %s186 = sphi 0, %s183
      %s187 = sphi 0, %s186
      %s203 = sphi 0, %s187
      %s209 = sphi 0, %s211
      %s212 = sphi 0, %s209
      %s213 = sphi 0, %s212
      %s229 = sphi 0, %s213
      %s235 = sphi 0, %s237
      %s238 = sphi 0, %s235
      %s239 = sphi 0, %s238
      %s255 = sphi 0, %s239
      %s261 = sphi 0, %s263
      %s264 = sphi 0, %s261
      %s265 = sphi 0, %s264
      %s281 = sphi 0, %s265
      %s287 = sphi 0, %s289
      %s290 = sphi 0, %s287
      %s291 = sphi 0, %s290
      %s307 = sphi 0, %s291
      %s311 = sphi 0, %s311
      %s313 = sphi 0, %s311
      %s314 = sphi 0, %s313
      %s328 = sphi 0, %s314
      %s332 = sphi 0, %s332
      %s334 = sphi 0, %s332
      %s335 = sphi 0, %s334
      %s349 = sphi 0, %s335
    $region4: #{forward.1} parent=1 // loop_header_branch
      %24 = sbr.rel (%p22) target = $region8
    $region5: #{forward.1} parent=1 // loop_body
      %s26 = ssub.s32 %s21, 1
      %s27 = ssub.s32 %s21, 2
      %s28 = sadd.s32 %s21, 1
      %s30 = sadd.s32 %s29, 1
      %p33 = scmp.eq.s32.totalorder %s21, 2
      %p34 = scmp.ne.s32.totalorder %s29, %s31
      %p35 = scmp.eq.s32.totalorder %s21, 0
      %p36 = por %p34, %p35
      %p37 = scmp.ne.s32.totalorder %s29, %s31
      %p38 = scmp.eq.s32.totalorder %s26, 2
      %p39 = por %p37, %p38
      %p40 = scmp.ne.s32.totalorder %s31, %s32
      %p41 = scmp.eq.s32.totalorder %s26, 0
      %p42 = por %p40, %p41
      %p43 = scmp.ne.s32.totalorder %s31, %s32
      %p44 = scmp.eq.s32.totalorder %s27, 2
      %p45 = por %p43, %p44
      %p47 = scmp.ne.s32.totalorder %s32, %s46
      %p48 = scmp.eq.s32.totalorder %s27, 0
      %p49 = por %p47, %p48
      %s51 = sadd.s32 %s50, 1
      %p54 = scmp.eq.s32.totalorder %s21, 2
      %p55 = scmp.ne.s32.totalorder %s50, %s52
      %p56 = scmp.eq.s32.totalorder %s21, 0
      %p57 = por %p55, %p56
      %p58 = scmp.ne.s32.totalorder %s50, %s52
      %p59 = scmp.eq.s32.totalorder %s26, 2
      %p60 = por %p58, %p59
      %p61 = scmp.ne.s32.totalorder %s52, %s53
      %p62 = scmp.eq.s32.totalorder %s26, 0
      %p63 = por %p61, %p62
      %p64 = scmp.ne.s32.totalorder %s52, %s53
      %p65 = scmp.eq.s32.totalorder %s27, 2
      %p66 = por %p64, %p65
      %p68 = scmp.ne.s32.totalorder %s53, %s67
      %p69 = scmp.eq.s32.totalorder %s27, 0
      %p70 = por %p68, %p69
      %s72 = sadd.s32 %s71, 1
      %p75 = scmp.eq.s32.totalorder %s21, 2
      %p76 = scmp.ne.s32.totalorder %s71, %s73
      %p77 = scmp.eq.s32.totalorder %s21, 0
      %p78 = por %p76, %p77
      %p79 = scmp.ne.s32.totalorder %s71, %s73
      %p80 = scmp.eq.s32.totalorder %s26, 2
      %p81 = por %p79, %p80
      %p82 = scmp.ne.s32.totalorder %s73, %s74
      %p83 = scmp.eq.s32.totalorder %s26, 0
      %p84 = por %p82, %p83
      %p85 = scmp.ne.s32.totalorder %s73, %s74
      %p86 = scmp.eq.s32.totalorder %s27, 2
      %p87 = por %p85, %p86
      %p89 = scmp.ne.s32.totalorder %s74, %s88
      %p90 = scmp.eq.s32.totalorder %s27, 0
      %p91 = por %p89, %p90
      %s93 = sadd.s32 %s92, 1
      %p96 = scmp.eq.s32.totalorder %s21, 2
      %p97 = scmp.ne.s32.totalorder %s92, %s94
      %p98 = scmp.eq.s32.totalorder %s21, 0
      %p99 = por %p97, %p98
      %p100 = scmp.ne.s32.totalorder %s92, %s94
      %p101 = scmp.eq.s32.totalorder %s26, 2
      %p102 = por %p100, %p101
      %p103 = scmp.ne.s32.totalorder %s94, %s95
      %p104 = scmp.eq.s32.totalorder %s26, 0
      %p105 = por %p103, %p104
      %p106 = scmp.ne.s32.totalorder %s94, %s95
      %p107 = scmp.eq.s32.totalorder %s27, 2
      %p108 = por %p106, %p107
      %p110 = scmp.ne.s32.totalorder %s95, %s109
      %p111 = scmp.eq.s32.totalorder %s27, 0
      %p112 = por %p110, %p111
      %s114 = sadd.s32 %s113, 1
      %p117 = scmp.eq.s32.totalorder %s21, 2
      %p118 = scmp.ne.s32.totalorder %s113, %s115
      %p119 = scmp.eq.s32.totalorder %s21, 0
      %p120 = por %p118, %p119
      %p121 = scmp.ne.s32.totalorder %s113, %s115
      %p122 = scmp.eq.s32.totalorder %s26, 2
      %p123 = por %p121, %p122
      %p124 = scmp.ne.s32.totalorder %s115, %s116
      %p125 = scmp.eq.s32.totalorder %s26, 0
      %p126 = por %p124, %p125
      %p127 = scmp.ne.s32.totalorder %s115, %s116
      %p128 = scmp.eq.s32.totalorder %s27, 2
      %p129 = por %p127, %p128
      %p131 = scmp.ne.s32.totalorder %s116, %s130
      %p132 = scmp.eq.s32.totalorder %s27, 0
      %p133 = por %p131, %p132
      %s135 = sadd.s32 %s134, 1
      %p138 = scmp.eq.s32.totalorder %s21, 2
      %p139 = scmp.ne.s32.totalorder %s134, %s136
      %p140 = scmp.eq.s32.totalorder %s21, 0
      %p141 = por %p139, %p140
      %p142 = scmp.ne.s32.totalorder %s134, %s136
      %p143 = scmp.eq.s32.totalorder %s26, 2
      %p144 = por %p142, %p143
      %p145 = scmp.ne.s32.totalorder %s136, %s137
      %p146 = scmp.eq.s32.totalorder %s26, 0
      %p147 = por %p145, %p146
      %p148 = scmp.ne.s32.totalorder %s136, %s137
      %p149 = scmp.eq.s32.totalorder %s27, 2
      %p150 = por %p148, %p149
      %p152 = scmp.ne.s32.totalorder %s137, %s151
      %p153 = scmp.eq.s32.totalorder %s27, 0
      %p154 = por %p152, %p153
      %s155 = ssub.s32 %s21, %s28
      %p156 = scmp.eq.s32.totalorder %s155, 0
      %s158 = sadd.s32 %s157, 1
      %s159 = scalar_select %p156, %s157, %s158
      %p162 = pneg %p156
      %p163 = scmp.eq.s32.totalorder %s21, 2
      %p164 = por %p162, %p163
      %p165 = scmp.ne.s32.totalorder %s157, %s160
      %p166 = scmp.eq.s32.totalorder %s21, 0
      %p167 = por %p165, %p166
      %p168 = scmp.ne.s32.totalorder %s157, %s160
      %p169 = scmp.eq.s32.totalorder %s26, 2
      %p170 = por %p168, %p169
      %p171 = scmp.ne.s32.totalorder %s160, %s161
      %p172 = scmp.eq.s32.totalorder %s26, 0
      %p173 = por %p171, %p172
      %p174 = scmp.ne.s32.totalorder %s160, %s161
      %p175 = scmp.eq.s32.totalorder %s27, 2
      %p176 = por %p174, %p175
      %p178 = scmp.ne.s32.totalorder %s161, %s177
      %p179 = scmp.eq.s32.totalorder %s27, 0
      %p180 = por %p178, %p179
      %s181 = ssub.s32 %s21, %s28
      %p182 = scmp.eq.s32.totalorder %s181, 0
      %s184 = sadd.s32 %s183, 1
      %s185 = scalar_select %p182, %s183, %s184
      %p188 = pneg %p182
      %p189 = scmp.eq.s32.totalorder %s21, 2
      %p190 = por %p188, %p189
      %p191 = scmp.ne.s32.totalorder %s183, %s186
      %p192 = scmp.eq.s32.totalorder %s21, 0
      %p193 = por %p191, %p192
      %p194 = scmp.ne.s32.totalorder %s183, %s186
      %p195 = scmp.eq.s32.totalorder %s26, 2
      %p196 = por %p194, %p195
      %p197 = scmp.ne.s32.totalorder %s186, %s187
      %p198 = scmp.eq.s32.totalorder %s26, 0
      %p199 = por %p197, %p198
      %p200 = scmp.ne.s32.totalorder %s186, %s187
      %p201 = scmp.eq.s32.totalorder %s27, 2
      %p202 = por %p200, %p201
      %p204 = scmp.ne.s32.totalorder %s187, %s203
      %p205 = scmp.eq.s32.totalorder %s27, 0
      %p206 = por %p204, %p205
      %s207 = ssub.s32 %s21, %s28
      %p208 = scmp.eq.s32.totalorder %s207, 0
      %s210 = sadd.s32 %s209, 1
      %s211 = scalar_select %p208, %s209, %s210
      %p214 = pneg %p208
      %p215 = scmp.eq.s32.totalorder %s21, 2
      %p216 = por %p214, %p215
      %p217 = scmp.ne.s32.totalorder %s209, %s212
      %p218 = scmp.eq.s32.totalorder %s21, 0
      %p219 = por %p217, %p218
      %p220 = scmp.ne.s32.totalorder %s209, %s212
      %p221 = scmp.eq.s32.totalorder %s26, 2
      %p222 = por %p220, %p221
      %p223 = scmp.ne.s32.totalorder %s212, %s213
      %p224 = scmp.eq.s32.totalorder %s26, 0
      %p225 = por %p223, %p224
      %p226 = scmp.ne.s32.totalorder %s212, %s213
      %p227 = scmp.eq.s32.totalorder %s27, 2
      %p228 = por %p226, %p227
      %p230 = scmp.ne.s32.totalorder %s213, %s229
      %p231 = scmp.eq.s32.totalorder %s27, 0
      %p232 = por %p230, %p231
      %s233 = ssub.s32 %s21, %s28
      %p234 = scmp.eq.s32.totalorder %s233, 0
      %s236 = sadd.s32 %s235, 1
      %s237 = scalar_select %p234, %s235, %s236
      %p240 = pneg %p234
      %p241 = scmp.eq.s32.totalorder %s21, 2
      %p242 = por %p240, %p241
      %p243 = scmp.ne.s32.totalorder %s235, %s238
      %p244 = scmp.eq.s32.totalorder %s21, 0
      %p245 = por %p243, %p244
      %p246 = scmp.ne.s32.totalorder %s235, %s238
      %p247 = scmp.eq.s32.totalorder %s26, 2
      %p248 = por %p246, %p247
      %p249 = scmp.ne.s32.totalorder %s238, %s239
      %p250 = scmp.eq.s32.totalorder %s26, 0
      %p251 = por %p249, %p250
      %p252 = scmp.ne.s32.totalorder %s238, %s239
      %p253 = scmp.eq.s32.totalorder %s27, 2
      %p254 = por %p252, %p253
      %p256 = scmp.ne.s32.totalorder %s239, %s255
      %p257 = scmp.eq.s32.totalorder %s27, 0
      %p258 = por %p256, %p257
      %s259 = ssub.s32 %s21, %s28
      %p260 = scmp.eq.s32.totalorder %s259, 0
      %s262 = sadd.s32 %s261, 1
      %s263 = scalar_select %p260, %s261, %s262
      %p266 = pneg %p260
      %p267 = scmp.eq.s32.totalorder %s21, 2
      %p268 = por %p266, %p267
      %p269 = scmp.ne.s32.totalorder %s261, %s264
      %p270 = scmp.eq.s32.totalorder %s21, 0
      %p271 = por %p269, %p270
      %p272 = scmp.ne.s32.totalorder %s261, %s264
      %p273 = scmp.eq.s32.totalorder %s26, 2
      %p274 = por %p272, %p273
      %p275 = scmp.ne.s32.totalorder %s264, %s265
      %p276 = scmp.eq.s32.totalorder %s26, 0
      %p277 = por %p275, %p276
      %p278 = scmp.ne.s32.totalorder %s264, %s265
      %p279 = scmp.eq.s32.totalorder %s27, 2
      %p280 = por %p278, %p279
      %p282 = scmp.ne.s32.totalorder %s265, %s281
      %p283 = scmp.eq.s32.totalorder %s27, 0
      %p284 = por %p282, %p283
      %s285 = ssub.s32 %s21, %s28
      %p286 = scmp.eq.s32.totalorder %s285, 0
      %s288 = sadd.s32 %s287, 1
      %s289 = scalar_select %p286, %s287, %s288
      %p292 = pneg %p286
      %p293 = scmp.eq.s32.totalorder %s21, 2
      %p294 = por %p292, %p293
      %p295 = scmp.ne.s32.totalorder %s287, %s290
      %p296 = scmp.eq.s32.totalorder %s21, 0
      %p297 = por %p295, %p296
      %p298 = scmp.ne.s32.totalorder %s287, %s290
      %p299 = scmp.eq.s32.totalorder %s26, 2
      %p300 = por %p298, %p299
      %p301 = scmp.ne.s32.totalorder %s290, %s291
      %p302 = scmp.eq.s32.totalorder %s26, 0
      %p303 = por %p301, %p302
      %p304 = scmp.ne.s32.totalorder %s290, %s291
      %p305 = scmp.eq.s32.totalorder %s27, 2
      %p306 = por %p304, %p305
      %p308 = scmp.ne.s32.totalorder %s291, %s307
      %p309 = scmp.eq.s32.totalorder %s27, 0
      %p310 = por %p308, %p309
      %s312 = sadd.s32 %s311, 1
      %p315 = scmp.eq.s32.totalorder %s21, 2
      %p316 = scmp.ne.s32.totalorder %s311, %s313
      %p317 = scmp.eq.s32.totalorder %s21, 0
      %p318 = por %p316, %p317
      %p319 = scmp.ne.s32.totalorder %s311, %s313
      %p320 = scmp.eq.s32.totalorder %s26, 2
      %p321 = por %p319, %p320
      %p322 = scmp.ne.s32.totalorder %s313, %s314
      %p323 = scmp.eq.s32.totalorder %s26, 0
      %p324 = por %p322, %p323
      %p325 = scmp.ne.s32.totalorder %s313, %s314
      %p326 = scmp.eq.s32.totalorder %s27, 2
      %p327 = por %p325, %p326
      %p329 = scmp.ne.s32.totalorder %s314, %s328
      %p330 = scmp.eq.s32.totalorder %s27, 0
      %p331 = por %p329, %p330
      %s333 = sadd.s32 %s332, 1
      %p336 = scmp.eq.s32.totalorder %s21, 2
      %p337 = scmp.ne.s32.totalorder %s332, %s334
      %p338 = scmp.eq.s32.totalorder %s21, 0
      %p339 = por %p337, %p338
      %p340 = scmp.ne.s32.totalorder %s332, %s334
      %p341 = scmp.eq.s32.totalorder %s26, 2
      %p342 = por %p340, %p341
      %p343 = scmp.ne.s32.totalorder %s334, %s335
      %p344 = scmp.eq.s32.totalorder %s26, 0
      %p345 = por %p343, %p344
      %p346 = scmp.ne.s32.totalorder %s334, %s335
      %p347 = scmp.eq.s32.totalorder %s27, 2
      %p348 = por %p346, %p347
      %p350 = scmp.ne.s32.totalorder %s335, %s349
      %p351 = scmp.eq.s32.totalorder %s27, 0
      %p352 = por %p350, %p351
      %p353 = scmp.le.s32.totalorder 1, %s21
      %p354 = scmp.lt.s32.totalorder %s21, 4
      %p355 = pnand %p353, %p354
      %p356 = pneg %p355
      // Predicated region
      $region9: #{forward.1} parent=5 // pred_check
        _
      $region10: #{forward.1} parent=5 // pred_check_branch
        %358 = sbr.rel (%p355) target = $region12
      $region11: #{forward.1} parent=5 // pred_region
        %s359 = ssub.s32 %s21, 1
        // Predicated region
        $region13: #{forward.1} parent=11 // pred_check
          %p360 = pneg %p42
        $region14: #{forward.1} parent=11 // pred_check_branch
          %362 = sbr.rel (%p360) target = $region16
        $region15: #{forward.1} parent=11 // pred_region
          _
        $region16: #{forward.1} parent=11 // pred_fallthru
          _
        // Predicated region
        $region17: #{forward.1} parent=11 // pred_check
          %p363 = pneg %p63
        $region18: #{forward.1} parent=11 // pred_check_branch
          %365 = sbr.rel (%p363) target = $region20
        $region19: #{forward.1} parent=11 // pred_region
          %367 = vsyncadd [#allocation4], 0
          %s368 = sshll.u32 %s1, 4
          %s369 = int_to_ptr.hbm [resolvable:$true] %s368
          %s370 = sshll.u32 [#allocation3], 4
          %s371 = int_to_ptr.vmem [resolvable:$true] %s370
          %376 = dma.hbm_to_vmem [thread:$0]  %s369, 4096, %s371, [#allocation4], 128, 128, 8
        $region20: #{forward.1} parent=11 // pred_fallthru
          _
        // Predicated region
        $region21: #{forward.1} parent=11 // pred_check
          %p377 = pneg %p84
        $region22: #{forward.1} parent=11 // pred_check_branch
          %379 = sbr.rel (%p377) target = $region24
        $region23: #{forward.1} parent=11 // pred_region
          %381 = vsyncadd [#allocation6], 0
          %s382 = sshll.u32 %s2, 4
          %s383 = int_to_ptr.hbm [resolvable:$true] %s382
          %s384 = sshll.u32 [#allocation5], 4
          %s385 = int_to_ptr.vmem [resolvable:$true] %s384
          %390 = dma.hbm_to_vmem [thread:$0]  %s383, 2048, %s385, [#allocation6], 128, 128, 8
        $region24: #{forward.1} parent=11 // pred_fallthru
          _
        // Predicated region
        $region25: #{forward.1} parent=11 // pred_check
          %p391 = pneg %p105
        $region26: #{forward.1} parent=11 // pred_check_branch
          %393 = sbr.rel (%p391) target = $region28
        $region27: #{forward.1} parent=11 // pred_region
          _
        $region28: #{forward.1} parent=11 // pred_fallthru
          _
        // Predicated region
        $region29: #{forward.1} parent=11 // pred_check
          %p394 = pneg %p126
        $region30: #{forward.1} parent=11 // pred_check_branch
          %396 = sbr.rel (%p394) target = $region32
        $region31: #{forward.1} parent=11 // pred_region
          _
        $region32: #{forward.1} parent=11 // pred_fallthru
          _
        // Predicated region
        $region33: #{forward.1} parent=11 // pred_check
          %p397 = pneg %p147
        $region34: #{forward.1} parent=11 // pred_check_branch
          %399 = sbr.rel (%p397) target = $region36
        $region35: #{forward.1} parent=11 // pred_region
          _
        $region36: #{forward.1} parent=11 // pred_fallthru
          _
        // Predicated region
        $region37: #{forward.1} parent=11 // pred_check
          %p400 = pneg %p324
        $region38: #{forward.1} parent=11 // pred_check_branch
          %402 = sbr.rel (%p400) target = $region40
        $region39: #{forward.1} parent=11 // pred_region
          _
        $region40: #{forward.1} parent=11 // pred_fallthru
          _
      $region12: #{forward.1} parent=5 // pred_fallthru
        _
      %p403 = scmp.lt.s32.totalorder %s21, 3
      // Predicated region
      $region41: #{forward.1} parent=5 // pred_check
        %p404 = pneg %p403
      $region42: #{forward.1} parent=5 // pred_check_branch
        %406 = sbr.rel (%p404) target = $region44
      $region43: #{forward.1} parent=5 // pred_region
        // Predicated region
        $region45: #{forward.1} parent=43 // pred_check
          %p407 = pneg %p167
        $region46: #{forward.1} parent=43 // pred_check_branch
          %409 = sbr.rel (%p407) target = $region48
        $region47: #{forward.1} parent=43 // pred_region
          %p410 = scmp.lt.s32.totalorder %s21, 2
          %s411 = scalar_select %p410, %s21, 2
          %s412 = smul.addr %s411, 2
          %s413 = smul.addr %s412, 8
          %s414 = scalar_lea.vmem %s6, %s413
        $region48: #{forward.1} parent=43 // pred_fallthru
          _
        // Predicated region
        $region49: #{forward.1} parent=43 // pred_check
          %p415 = pneg %p193
        $region50: #{forward.1} parent=43 // pred_check_branch
          %417 = sbr.rel (%p415) target = $region52
        $region51: #{forward.1} parent=43 // pred_region
          %p418 = scmp.lt.s32.totalorder %s21, 2
          %s419 = scalar_select %p418, %s21, 2
          %s420 = smul.addr %s419, 2
          %s421 = scalar_lea.vmem %s7, %s420
        $region52: #{forward.1} parent=43 // pred_fallthru
          _
        // Predicated region
        $region53: #{forward.1} parent=43 // pred_check
          %p422 = pneg %p219
        $region54: #{forward.1} parent=43 // pred_check_branch
          %424 = sbr.rel (%p422) target = $region56
        $region55: #{forward.1} parent=43 // pred_region
          %s425 = sand.u32 %s21, 1
          %s426 = scalar_lea.sflag [#allocation4], %s425
          %s427 = sand.u32 %s209, 1
          %s428 = smul.addr %s427, 192
          %s429 = scalar_lea.vmem [#allocation7], %s428
          %431 = vsyncadd %s426, 0
          %s432 = smul.addr %s21, 48
          %s433 = smul.addr %s432, 4
          %s434 = scalar_lea.hbm %s8, %s433
          %s435 = sshll.u32 %s434, 4
          %s436 = int_to_ptr.hbm [resolvable:$true] %s435
          %s437 = sshll.u32 %s429, 4
          %s438 = int_to_ptr.vmem [resolvable:$true] %s437
          %443 = dma.hbm_to_vmem [thread:$0]  %s436, 3072, %s438, %s426, 192, 192, 12
        $region56: #{forward.1} parent=43 // pred_fallthru
          _
        // Predicated region
        $region57: #{forward.1} parent=43 // pred_check
          %p444 = pneg %p245
        $region58: #{forward.1} parent=43 // pred_check_branch
          %446 = sbr.rel (%p444) target = $region60
        $region59: #{forward.1} parent=43 // pred_region
          %s447 = sand.u32 %s21, 1
          %s448 = scalar_lea.sflag [#allocation4], %s447
          %s449 = sand.u32 %s235, 1
          %s450 = smul.addr %s449, 64
          %s451 = scalar_lea.vmem [#allocation8], %s450
          %453 = vsyncadd %s448, 0
          %s454 = smul.addr %s21, 16
          %s455 = smul.addr %s454, 4
          %s456 = scalar_lea.hbm %s9, %s455
          %s457 = sshll.u32 %s456, 4
          %s458 = int_to_ptr.hbm [resolvable:$true] %s457
          %s459 = sshll.u32 %s451, 4
          %s460 = int_to_ptr.vmem [resolvable:$true] %s459
          %465 = dma.hbm_to_vmem [thread:$0]  %s458, 1024, %s460, %s448, 64, 64, 4
        $region60: #{forward.1} parent=43 // pred_fallthru
          _
        // Predicated region
        $region61: #{forward.1} parent=43 // pred_check
          %p466 = pneg %p271
        $region62: #{forward.1} parent=43 // pred_check_branch
          %468 = sbr.rel (%p466) target = $region64
        $region63: #{forward.1} parent=43 // pred_region
          %s469 = sand.u32 %s21, 1
          %s470 = scalar_lea.sflag [#allocation4], %s469
          %s471 = sand.u32 %s261, 1
          %s472 = smul.addr %s471, 128
          %s473 = scalar_lea.vmem [#allocation9], %s472
          %475 = vsyncadd %s470, 0
          %s476 = smul.addr %s21, 32
          %s477 = smul.addr %s476, 4
          %s478 = scalar_lea.hbm %s10, %s477
          %s479 = sshll.u32 %s478, 4
          %s480 = int_to_ptr.hbm [resolvable:$true] %s479
          %s481 = sshll.u32 %s473, 4
          %s482 = int_to_ptr.vmem [resolvable:$true] %s481
          %487 = dma.hbm_to_vmem [thread:$0]  %s480, 2048, %s482, %s470, 128, 128, 8
        $region64: #{forward.1} parent=43 // pred_fallthru
          _
        // Predicated region
        $region65: #{forward.1} parent=43 // pred_check
          %p488 = pneg %p297
        $region66: #{forward.1} parent=43 // pred_check_branch
          %490 = sbr.rel (%p488) target = $region68
        $region67: #{forward.1} parent=43 // pred_region
          %s491 = sand.u32 %s21, 1
          %s492 = scalar_lea.sflag [#allocation4], %s491
          %s493 = sand.u32 %s287, 1
          %s494 = smul.addr %s493, 128
          %s495 = scalar_lea.vmem [#allocation10], %s494
          %497 = vsyncadd %s492, 0
          %s498 = smul.addr %s21, 32
          %s499 = smul.addr %s498, 4
          %s500 = scalar_lea.hbm %s11, %s499
          %s501 = sshll.u32 %s500, 4
          %s502 = int_to_ptr.hbm [resolvable:$true] %s501
          %s503 = sshll.u32 %s495, 4
          %s504 = int_to_ptr.vmem [resolvable:$true] %s503
          %509 = dma.hbm_to_vmem [thread:$0]  %s502, 2048, %s504, %s492, 64, 64, 4
        $region68: #{forward.1} parent=43 // pred_fallthru
          _
      $region44: #{forward.1} parent=5 // pred_fallthru
        _
      %p510 = scmp.le.s32.totalorder 1, %s21
      %p511 = scmp.lt.s32.totalorder %s21, 4
      %p512 = pnand %p510, %p511
      %p513 = pneg %p512
      // Predicated region
      $region69: #{forward.1} parent=5 // pred_check
        _
      $region70: #{forward.1} parent=5 // pred_check_branch
        %515 = sbr.rel (%p512) target = $region72
      $region71: #{forward.1} parent=5 // pred_region
        %s516 = ssub.s32 %s21, 1
        // Predicated region
        $region73: #{forward.1} parent=71 // pred_check
          %p517 = pneg %p63
        $region74: #{forward.1} parent=71 // pred_check_branch
          %519 = sbr.rel (%p517) target = $region76
        $region75: #{forward.1} parent=71 // pred_region
          %521 = dma.done [#allocation4], 4096
        $region76: #{forward.1} parent=71 // pred_fallthru
          _
        // Predicated region
        $region77: #{forward.1} parent=71 // pred_check
          %p522 = pneg %p84
        $region78: #{forward.1} parent=71 // pred_check_branch
          %524 = sbr.rel (%p522) target = $region80
        $region79: #{forward.1} parent=71 // pred_region
          %526 = dma.done [#allocation6], 2048
        $region80: #{forward.1} parent=71 // pred_fallthru
          _
        %s527 = sand.u32 %s26, 1
        %s528 = scalar_lea.sflag [#allocation4], %s527
        %s529 = sand.u32 %s212, 1
        %s530 = smul.addr %s529, 192
        %s531 = scalar_lea.vmem [#allocation7], %s530
        // Predicated region
        $region81: #{forward.1} parent=71 // pred_check
          %p532 = pneg %p225
        $region82: #{forward.1} parent=71 // pred_check_branch
          %534 = sbr.rel (%p532) target = $region84
        $region83: #{forward.1} parent=71 // pred_region
          %536 = dma.done %s528, 3072
        $region84: #{forward.1} parent=71 // pred_fallthru
          _
        %s537 = sand.u32 %s26, 1
        %s538 = scalar_lea.sflag [#allocation4], %s537
        %s539 = sand.u32 %s238, 1
        %s540 = smul.addr %s539, 64
        %s541 = scalar_lea.vmem [#allocation8], %s540
        // Predicated region
        $region85: #{forward.1} parent=71 // pred_check
          %p542 = pneg %p251
        $region86: #{forward.1} parent=71 // pred_check_branch
          %544 = sbr.rel (%p542) target = $region88
        $region87: #{forward.1} parent=71 // pred_region
          %546 = dma.done %s538, 1024
        $region88: #{forward.1} parent=71 // pred_fallthru
          _
        %s547 = sand.u32 %s26, 1
        %s548 = scalar_lea.sflag [#allocation4], %s547
        %s549 = sand.u32 %s264, 1
        %s550 = smul.addr %s549, 128
        %s551 = scalar_lea.vmem [#allocation9], %s550
        // Predicated region
        $region89: #{forward.1} parent=71 // pred_check
          %p552 = pneg %p277
        $region90: #{forward.1} parent=71 // pred_check_branch
          %554 = sbr.rel (%p552) target = $region92
        $region91: #{forward.1} parent=71 // pred_region
          %556 = dma.done %s548, 2048
        $region92: #{forward.1} parent=71 // pred_fallthru
          _
        %s557 = sand.u32 %s26, 1
        %s558 = scalar_lea.sflag [#allocation4], %s557
        %s559 = sand.u32 %s290, 1
        %s560 = smul.addr %s559, 128
        %s561 = scalar_lea.vmem [#allocation10], %s560
        // Predicated region
        $region93: #{forward.1} parent=71 // pred_check
          %p562 = pneg %p303
        $region94: #{forward.1} parent=71 // pred_check_branch
          %564 = sbr.rel (%p562) target = $region96
        $region95: #{forward.1} parent=71 // pred_region
          %566 = dma.done %s558, 2048
        $region96: #{forward.1} parent=71 // pred_fallthru
          _
        %p567 = pneg %p42
        %p568 = pneg %p39
        %p569 = pneg %p63
        %p570 = pneg %p60
        %p571 = pneg %p84
        %p572 = pneg %p81
        %p573 = pneg %p105
        %p574 = pneg %p102
        %p575 = pneg %p126
        %p576 = pneg %p123
        %p577 = pneg %p147
        %p578 = pneg %p144
        %p579 = scmp.lt.s32.totalorder %s26, 2
        %s580 = scalar_select %p579, %s26, 2
        %s581 = smul.addr %s580, 2
        %s582 = smul.addr %s581, 8
        %s583 = scalar_lea.vmem %s6, %s582
        %p584 = pneg %p173
        %p585 = pneg %p170
        %p586 = scmp.lt.s32.totalorder %s26, 2
        %s587 = scalar_select %p586, %s26, 2
        %s588 = smul.addr %s587, 2
        %s589 = scalar_lea.vmem %s7, %s588
        %p590 = pneg %p199
        %p591 = pneg %p196
        %s592 = sand.u32 %s26, 1
        %s593 = scalar_lea.sflag [#allocation4], %s592
        %s594 = sand.u32 %s212, 1
        %s595 = smul.addr %s594, 192
        %s596 = scalar_lea.vmem [#allocation7], %s595
        %p597 = pneg %p225
        %p598 = pneg %p222
        %s599 = sand.u32 %s26, 1
        %s600 = scalar_lea.sflag [#allocation4], %s599
        %s601 = sand.u32 %s238, 1
        %s602 = smul.addr %s601, 64
        %s603 = scalar_lea.vmem [#allocation8], %s602
        %p604 = pneg %p251
        %p605 = pneg %p248
        %s606 = sand.u32 %s26, 1
        %s607 = scalar_lea.sflag [#allocation4], %s606
        %s608 = sand.u32 %s264, 1
        %s609 = smul.addr %s608, 128
        %s610 = scalar_lea.vmem [#allocation9], %s609
        %p611 = pneg %p277
        %p612 = pneg %p274
        %s613 = sand.u32 %s26, 1
        %s614 = scalar_lea.sflag [#allocation4], %s613
        %s615 = sand.u32 %s290, 1
        %s616 = smul.addr %s615, 128
        %s617 = scalar_lea.vmem [#allocation10], %s616
        %p618 = pneg %p303
        %p619 = pneg %p300
        %p620 = pneg %p324
        %p621 = pneg %p321
        %p622 = pneg %p345
        %p623 = pneg %p342
        %p624 = scmp.lt.s32.totalorder %s26, 2
        %s625 = scalar_select %p624, %s26, 2
        %s626 = smul.addr %s625, 2
        %s627 = smul.addr %s626, 8
        %s628 = scalar_lea.vmem %s6, %s627
        %p629 = scmp.lt.s32.totalorder %s26, 2
        %s630 = scalar_select %p629, %s26, 2
        %s631 = smul.addr %s630, 2
        %s632 = scalar_lea.vmem %s7, %s631
        %p633 = scmp.eq.s32.totalorder %s26, 0
        // Predicated region
        $region97: #{forward.1} parent=71 // pred_check
          %p634 = pneg %p633
        $region98: #{forward.1} parent=71 // pred_check_branch
          %636 = sbr.rel (%p634) target = $region100
        $region99: #{forward.1} parent=71 // pred_region
          %v637 = vld [vmem:[%s0] sm:$0xff]
          %v638 = vld [vmem:[%s0 + $0x8] sm:$0xff]
          %v639 = vlaneseq
          %v640 = vand.u32 %v639, 127
          %v641 = vadd.s32 %v640, 128
          %642 = vset.pattern.permute.xlu0 0
          %643 = vperm.xlu0 %642, %v637
          %v644 = vpop.permute.xlu0 %643
          %645 = vset.pattern.permute.xlu0 0
          %646 = vperm.xlu0 %645, %v638
          %v647 = vpop.permute.xlu0 %646
          %vm648 = vcmp.eq.s32.totalorder %v644, %v640
          %vm649 = vcmp.eq.s32.totalorder %v644, %v641
          %vm650 = vcmp.eq.s32.totalorder %v647, %v640
          %vm651 = vcmp.eq.s32.totalorder %v647, %v641
          %v652 = vsel %vm648, 1, 0
          %v653 = vsel %vm649, 1, 0
          %v654 = vsel %vm650, 1, 0
          %v655 = vsel %vm651, 1, 0
          %v656 = vcvt.s32.f32 %v652
          %v657 = vcvt.s32.f32 %v653
          %v658 = vcvt.s32.f32 %v654
          %v659 = vcvt.s32.f32 %v655
          %v660 = vld [vmem:[#allocation3] sm:$0xff]
          %v661 = vld [vmem:[#allocation3 + $0x8] sm:$0xff]
          %v662 = vld [vmem:[#allocation3 + $0x10] sm:$0xff]
          %v663 = vld [vmem:[#allocation3 + $0x18] sm:$0xff]
          %v664 = vld [vmem:[#allocation3 + $0x20] sm:$0xff]
          %v665 = vld [vmem:[#allocation3 + $0x28] sm:$0xff]
          %v666 = vld [vmem:[#allocation3 + $0x30] sm:$0xff]
          %v667 = vld [vmem:[#allocation3 + $0x38] sm:$0xff]
          %v668 = vld [vmem:[#allocation3 + $0x40] sm:$0xff]
          %v669 = vld [vmem:[#allocation3 + $0x48] sm:$0xff]
          %v670 = vld [vmem:[#allocation3 + $0x50] sm:$0xff]
          %v671 = vld [vmem:[#allocation3 + $0x58] sm:$0xff]
          %v672 = vld [vmem:[#allocation3 + $0x60] sm:$0xff]
          %v673 = vld [vmem:[#allocation3 + $0x68] sm:$0xff]
          %v674 = vld [vmem:[#allocation3 + $0x70] sm:$0xff]
          %v675 = vld [vmem:[#allocation3 + $0x78] sm:$0xff]
          %v676 = vld [vmem:[#allocation3 + $0x80] sm:$0xff]
          %v677 = vld [vmem:[#allocation3 + $0x88] sm:$0xff]
          %v678 = vld [vmem:[#allocation3 + $0x90] sm:$0xff]
          %v679 = vld [vmem:[#allocation3 + $0x98] sm:$0xff]
          %v680 = vld [vmem:[#allocation3 + $0xa0] sm:$0xff]
          %v681 = vld [vmem:[#allocation3 + $0xa8] sm:$0xff]
          %v682 = vld [vmem:[#allocation3 + $0xb0] sm:$0xff]
          %v683 = vld [vmem:[#allocation3 + $0xb8] sm:$0xff]
          %v684 = vld [vmem:[#allocation3 + $0xc0] sm:$0xff]
          %v685 = vld [vmem:[#allocation3 + $0xc8] sm:$0xff]
          %v686 = vld [vmem:[#allocation3 + $0xd0] sm:$0xff]
          %v687 = vld [vmem:[#allocation3 + $0xd8] sm:$0xff]
          %v688 = vld [vmem:[#allocation3 + $0xe0] sm:$0xff]
          %v689 = vld [vmem:[#allocation3 + $0xe8] sm:$0xff]
          %v690 = vld [vmem:[#allocation3 + $0xf0] sm:$0xff]
          %v691 = vld [vmem:[#allocation3 + $0xf8] sm:$0xff]
          %v692 = vld [vmem:[%s3] sm:$0xff]
          %v693 = vld [vmem:[%s3 + $0x8] sm:$0xff]
          %694 = vmatpush.msra.mxu0 %v675
          %695 = vmatpush.msra.mxu0 %v674
          %696 = vmatpush.msra.mxu0 %v673
          %697 = vmatpush.msra.mxu0 %v672
          %698 = vmatpush.msra.mxu0 %v671
          %699 = vmatpush.msra.mxu0 %v670
          %700 = vmatpush.msra.mxu0 %v669
          %701 = vmatpush.msra.mxu0 %v668
          %702 = vmatpush.msra.mxu0 %v667
          %703 = vmatpush.msra.mxu0 %v666
          %704 = vmatpush.msra.mxu0 %v665
          %705 = vmatpush.msra.mxu0 %v664
          %706 = vmatpush.msra.mxu0 %v663
          %707 = vmatpush.msra.mxu0 %v662
          %708 = vmatpush.msra.mxu0 %v661
          %709 = vmatpush.msra.mxu0 %v660
          %710 = vmatmul.f32.gmra.mxu0 %v656
          %v711 = vpop.f32.mrf.mxu0
          %v712 = vadd.f32 %v692, %v711
          %713 = vmatmul.f32.gmra.mxu0 %v658
          %v714 = vpop.f32.mrf.mxu0
          %v715 = vadd.f32 %v693, %v714
          %716 = vdwg.mxu0
          %717 = vmatpush.msra.mxu0 %v691
          %718 = vmatpush.msra.mxu0 %v690
          %719 = vmatpush.msra.mxu0 %v689
          %720 = vmatpush.msra.mxu0 %v688
          %721 = vmatpush.msra.mxu0 %v687
          %722 = vmatpush.msra.mxu0 %v686
          %723 = vmatpush.msra.mxu0 %v685
          %724 = vmatpush.msra.mxu0 %v684
          %725 = vmatpush.msra.mxu0 %v683
          %726 = vmatpush.msra.mxu0 %v682
          %727 = vmatpush.msra.mxu0 %v681
          %728 = vmatpush.msra.mxu0 %v680
          %729 = vmatpush.msra.mxu0 %v679
          %730 = vmatpush.msra.mxu0 %v678
          %731 = vmatpush.msra.mxu0 %v677
          %732 = vmatpush.msra.mxu0 %v676
          %733 = vmatmul.f32.gmra.mxu0 %v657
          %v734 = vpop.f32.mrf.mxu0
          %v735 = vadd.f32 %v712, %v734
          %736 = vmatmul.f32.gmra.mxu0 %v659
          %v737 = vpop.f32.mrf.mxu0
          %v738 = vadd.f32 %v715, %v737
          %739 = vdwg.mxu0
          %740 = vst [vmem:[#allocation2] sm:$0xff] %v735
          %741 = vst [vmem:[#allocation2 + $0x8] sm:$0xff] %v738
        $region100: #{forward.1} parent=71 // pred_fallthru
          _
        %v742 = vld [vmem:[#allocation2] sm:$0xff]
        %v743 = vld [vmem:[#allocation2 + $0x8] sm:$0xff]
        %v744 = vld [vmem:[%s4] sm:$0xff]
        %v745 = vld [vmem:[%s4 + $0x8] sm:$0xff]
        %v746 = vld [vmem:[%s5] sm:$0x3]
        %v747 = vld [vmem:[%s628] sm:$0xff]
        %v748 = vld [vmem:[%s628 + $0x8] sm:$0x1]
        %v749 = vld [vmem:[%s531] sm:$0xff]
        %v750 = vld [vmem:[%s531 + $0x8] sm:$0xf]
        %v751 = vld [vmem:[%s531 + $0xc] sm:$0xff]
        %v752 = vld [vmem:[%s531 + $0x14] sm:$0xf]
        %v753 = vld [vmem:[%s531 + $0x18] sm:$0xff]
        %v754 = vld [vmem:[%s531 + $0x20] sm:$0xf]
        %v755 = vld [vmem:[%s531 + $0x24] sm:$0xff]
        %v756 = vld [vmem:[%s531 + $0x2c] sm:$0xf]
        %v757 = vld [vmem:[%s531 + $0x30] sm:$0xff]
        %v758 = vld [vmem:[%s531 + $0x38] sm:$0xf]
        %v759 = vld [vmem:[%s531 + $0x3c] sm:$0xff]
        %v760 = vld [vmem:[%s531 + $0x44] sm:$0xf]
        %v761 = vld [vmem:[%s531 + $0x48] sm:$0xff]
        %v762 = vld [vmem:[%s531 + $0x50] sm:$0xf]
        %v763 = vld [vmem:[%s531 + $0x54] sm:$0xff]
        %v764 = vld [vmem:[%s531 + $0x5c] sm:$0xf]
        %v765 = vld [vmem:[%s531 + $0x60] sm:$0xff]
        %v766 = vld [vmem:[%s531 + $0x68] sm:$0xf]
        %v767 = vld [vmem:[%s531 + $0x6c] sm:$0xff]
        %v768 = vld [vmem:[%s531 + $0x74] sm:$0xf]
        %v769 = vld [vmem:[%s531 + $0x78] sm:$0xff]
        %v770 = vld [vmem:[%s531 + $0x80] sm:$0xf]
        %v771 = vld [vmem:[%s531 + $0x84] sm:$0xff]
        %v772 = vld [vmem:[%s531 + $0x8c] sm:$0xf]
        %v773 = vld [vmem:[%s531 + $0x90] sm:$0xff]
        %v774 = vld [vmem:[%s531 + $0x98] sm:$0xf]
        %v775 = vld [vmem:[%s531 + $0x9c] sm:$0xff]
        %v776 = vld [vmem:[%s531 + $0xa4] sm:$0xf]
        %v777 = vld [vmem:[%s531 + $0xa8] sm:$0xff]
        %v778 = vld [vmem:[%s531 + $0xb0] sm:$0xf]
        %v779 = vld [vmem:[%s531 + $0xb4] sm:$0xff]
        %v780 = vld [vmem:[%s531 + $0xbc] sm:$0xf]
        %v781 = vld [vmem:[%s541] sm:$0xf]
        %v782 = vld [vmem:[%s541 + $0x4] sm:$0xf]
        %v783 = vld [vmem:[%s541 + $0x8] sm:$0xf]
        %v784 = vld [vmem:[%s541 + $0xc] sm:$0xf]
        %v785 = vld [vmem:[%s541 + $0x10] sm:$0xf]
        %v786 = vld [vmem:[%s541 + $0x14] sm:$0xf]
        %v787 = vld [vmem:[%s541 + $0x18] sm:$0xf]
        %v788 = vld [vmem:[%s541 + $0x1c] sm:$0xf]
        %v789 = vld [vmem:[%s541 + $0x20] sm:$0xf]
        %v790 = vld [vmem:[%s541 + $0x24] sm:$0xf]
        %v791 = vld [vmem:[%s541 + $0x28] sm:$0xf]
        %v792 = vld [vmem:[%s541 + $0x2c] sm:$0xf]
        %v793 = vld [vmem:[%s541 + $0x30] sm:$0xf]
        %v794 = vld [vmem:[%s541 + $0x34] sm:$0xf]
        %v795 = vld [vmem:[%s541 + $0x38] sm:$0xf]
        %v796 = vld [vmem:[%s541 + $0x3c] sm:$0xf]
        %v797 = vld [vmem:[%s551] sm:$0xff]
        %v798 = vld [vmem:[%s551 + $0x8] sm:$0xff]
        %v799 = vld [vmem:[%s551 + $0x10] sm:$0xff]
        %v800 = vld [vmem:[%s551 + $0x18] sm:$0xff]
        %v801 = vld [vmem:[%s551 + $0x20] sm:$0xff]
        %v802 = vld [vmem:[%s551 + $0x28] sm:$0xff]
        %v803 = vld [vmem:[%s551 + $0x30] sm:$0xff]
        %v804 = vld [vmem:[%s551 + $0x38] sm:$0xff]
        %v805 = vld [vmem:[%s551 + $0x40] sm:$0xff]
        %v806 = vld [vmem:[%s551 + $0x48] sm:$0xff]
        %v807 = vld [vmem:[%s551 + $0x50] sm:$0xff]
        %v808 = vld [vmem:[%s551 + $0x58] sm:$0xff]
        %v809 = vld [vmem:[%s551 + $0x60] sm:$0xff]
        %v810 = vld [vmem:[%s551 + $0x68] sm:$0xff]
        %v811 = vld [vmem:[%s551 + $0x70] sm:$0xff]
        %v812 = vld [vmem:[%s551 + $0x78] sm:$0xff]
        %v813 = vld [vmem:[%s561] sm:$0xf]
        %v814 = vld [vmem:[%s561 + $0x4] sm:$0xf]
        %v815 = vld [vmem:[%s561 + $0x8] sm:$0xf]
        %v816 = vld [vmem:[%s561 + $0xc] sm:$0xf]
        %v817 = vld [vmem:[%s561 + $0x10] sm:$0xf]
        %v818 = vld [vmem:[%s561 + $0x14] sm:$0xf]
        %v819 = vld [vmem:[%s561 + $0x18] sm:$0xf]
        %v820 = vld [vmem:[%s561 + $0x1c] sm:$0xf]
        %v821 = vld [vmem:[%s561 + $0x20] sm:$0xf]
        %v822 = vld [vmem:[%s561 + $0x24] sm:$0xf]
        %v823 = vld [vmem:[%s561 + $0x28] sm:$0xf]
        %v824 = vld [vmem:[%s561 + $0x2c] sm:$0xf]
        %v825 = vld [vmem:[%s561 + $0x30] sm:$0xf]
        %v826 = vld [vmem:[%s561 + $0x34] sm:$0xf]
        %v827 = vld [vmem:[%s561 + $0x38] sm:$0xf]
        %v828 = vld [vmem:[%s561 + $0x3c] sm:$0xf]
        %v829 = vld [vmem:[%s561 + $0x40] sm:$0xf]
        %v830 = vld [vmem:[%s561 + $0x44] sm:$0xf]
        %v831 = vld [vmem:[%s561 + $0x48] sm:$0xf]
        %v832 = vld [vmem:[%s561 + $0x4c] sm:$0xf]
        %v833 = vld [vmem:[%s561 + $0x50] sm:$0xf]
        %v834 = vld [vmem:[%s561 + $0x54] sm:$0xf]
        %v835 = vld [vmem:[%s561 + $0x58] sm:$0xf]
        %v836 = vld [vmem:[%s561 + $0x5c] sm:$0xf]
        %v837 = vld [vmem:[%s561 + $0x60] sm:$0xf]
        %v838 = vld [vmem:[%s561 + $0x64] sm:$0xf]
        %v839 = vld [vmem:[%s561 + $0x68] sm:$0xf]
        %v840 = vld [vmem:[%s561 + $0x6c] sm:$0xf]
        %v841 = vld [vmem:[%s561 + $0x70] sm:$0xf]
        %v842 = vld [vmem:[%s561 + $0x74] sm:$0xf]
        %v843 = vld [vmem:[%s561 + $0x78] sm:$0xf]
        %v844 = vld [vmem:[%s561 + $0x7c] sm:$0xf]
        %v845 = vld [vmem:[%s632] sm:$0x3]
        %846 = vadd.xlane.f32.xlu0 %v742
        %v847 = vpop.xlane.xlu0 %846
        %848 = vadd.xlane.f32.xlu0 %v743
        %v849 = vpop.xlane.xlu0 %848
        %v850 = vrcp.pop 128.0
        %v851 = vmul.f32 128.0, %v850
        %v852 = vsub.f32 1.0, %v851
        %v853 = vmul.f32 %v850, %v852
        %v854 = vadd.f32 %v850, %v853
        %vm855 = vweird.f32 %v850
        %v856 = vsel %vm855, %v850, %v854
        %v857 = vmul.f32 %v847, %v856
        %v858 = vmul.f32 %v849, %v856
        %v859 = vsub.f32 %v742, %v857
        %v860 = vsub.f32 %v743, %v858
        %v861 = vmul.f32 %v859, %v859
        %v862 = vmul.f32 %v860, %v860
        %863 = vadd.xlane.f32.xlu0 %v861
        %v864 = vpop.xlane.xlu0 %863
        %865 = vadd.xlane.f32.xlu0 %v862
        %v866 = vpop.xlane.xlu0 %865
        %v867 = vmul.f32 %v864, %v856
        %v868 = vmul.f32 %v866, %v856
        %v869 = vadd.f32 %v867, 1e-05
        %v870 = vadd.f32 %v868, 1e-05
        %v871 = vrsqrt.pop %v869
        %v872 = vmul.f32 %v871, %v869
        %v873 = vmul.f32 %v872, %v871
        %v874 = vmul.f32 0.5, %v873
        %v875 = vsub.f32 1.5, %v874
        %v876 = vmul.f32 %v871, %v875
        %vm877 = vweird.f32 %v869
        %vm878 = vweird.f32 %v871
        %vm879 = vmor %vm877, %vm878
        %v880 = vsel %vm879, %v871, %v876
        %v881 = vrsqrt.pop %v870
        %v882 = vmul.f32 %v881, %v870
        %v883 = vmul.f32 %v882, %v881
        %v884 = vmul.f32 0.5, %v883
        %v885 = vsub.f32 1.5, %v884
        %v886 = vmul.f32 %v881, %v885
        %vm887 = vweird.f32 %v870
        %vm888 = vweird.f32 %v881
        %vm889 = vmor %vm887, %vm888
        %v890 = vsel %vm889, %v881, %v886
        %v891 = vmul.f32 %v859, %v880
        %v892 = vmul.f32 %v860, %v890
        %v893 = vperm.slane %v747, 0
        %v894 = vmul.f32 %v891, %v893
        %v895 = vmul.f32 %v892, %v893
        %v896 = vperm.slane %v747, 1
        %v897 = vadd.f32 %v894, %v896
        %v898 = vadd.f32 %v895, %v896
        %v899 = vpack.c.bf16 %v898, %v897
        %v932 = vunpack.c.l.b16 %v749
        %v933 = vunpack.c.h.b16 %v749
        %v934 = vunpack.c.l.b16 %v750
        %v935 = vunpack.c.l.b16 %v751
        %v936 = vunpack.c.h.b16 %v751
        %v937 = vunpack.c.l.b16 %v752
        %v938 = vunpack.c.l.b16 %v753
        %v939 = vunpack.c.h.b16 %v753
        %v940 = vunpack.c.l.b16 %v754
        %v941 = vunpack.c.l.b16 %v755
        %v942 = vunpack.c.h.b16 %v755
        %v943 = vunpack.c.l.b16 %v756
        %v944 = vunpack.c.l.b16 %v757
        %v945 = vunpack.c.h.b16 %v757
        %v946 = vunpack.c.l.b16 %v758
        %v947 = vunpack.c.l.b16 %v759
        %v948 = vunpack.c.h.b16 %v759
        %v949 = vunpack.c.l.b16 %v760
        %v950 = vunpack.c.l.b16 %v761
        %v951 = vunpack.c.h.b16 %v761
        %v952 = vunpack.c.l.b16 %v762
        %v953 = vunpack.c.l.b16 %v763
        %v954 = vunpack.c.h.b16 %v763
        %v955 = vunpack.c.l.b16 %v764
        %v956 = vunpack.c.l.b16 %v765
        %v957 = vunpack.c.h.b16 %v765
        %v958 = vunpack.c.l.b16 %v766
        %v959 = vunpack.c.l.b16 %v767
        %v960 = vunpack.c.h.b16 %v767
        %v961 = vunpack.c.l.b16 %v768
        %v962 = vunpack.c.l.b16 %v769
        %v963 = vunpack.c.h.b16 %v769
        %v964 = vunpack.c.l.b16 %v770
        %v965 = vunpack.c.l.b16 %v771
        %v966 = vunpack.c.h.b16 %v771
        %v967 = vunpack.c.l.b16 %v772
        %v968 = vunpack.c.l.b16 %v773
        %v969 = vunpack.c.h.b16 %v773
        %v970 = vunpack.c.l.b16 %v774
        %v971 = vunpack.c.l.b16 %v775
        %v972 = vunpack.c.h.b16 %v775
        %v973 = vunpack.c.l.b16 %v776
        %v974 = vunpack.c.l.b16 %v777
        %v975 = vunpack.c.h.b16 %v777
        %v976 = vunpack.c.l.b16 %v778
        %v977 = vunpack.c.l.b16 %v779
        %v978 = vunpack.c.h.b16 %v779
        %v979 = vunpack.c.l.b16 %v780
        %v980 = vpack.c.b16 %v935, %v932
        %v981 = vpack.c.b16 %v936, %v933
        %v982 = vpack.c.b16 %v937, %v934
        %v983 = vpack.c.b16 %v941, %v938
        %v984 = vpack.c.b16 %v942, %v939
        %v985 = vpack.c.b16 %v943, %v940
        %v986 = vpack.c.b16 %v947, %v944
        %v987 = vpack.c.b16 %v948, %v945
        %v988 = vpack.c.b16 %v949, %v946
        %v989 = vpack.c.b16 %v953, %v950
        %v990 = vpack.c.b16 %v954, %v951
        %v991 = vpack.c.b16 %v955, %v952
        %v992 = vpack.c.b16 %v959, %v956
        %v993 = vpack.c.b16 %v960, %v957
        %v994 = vpack.c.b16 %v961, %v958
        %v995 = vpack.c.b16 %v965, %v962
        %v996 = vpack.c.b16 %v966, %v963
        %v997 = vpack.c.b16 %v967, %v964
        %v998 = vpack.c.b16 %v971, %v968
        %v999 = vpack.c.b16 %v972, %v969
        %v1000 = vpack.c.b16 %v973, %v970
        %v1001 = vpack.c.b16 %v977, %v974
        %v1002 = vpack.c.b16 %v978, %v975
        %v1003 = vpack.c.b16 %v979, %v976
        %1028 = vmatpush.bf16.msra.mxu0 %v1001
        %1029 = vmatpush.bf16.msra.mxu0 %v998
        %1030 = vmatpush.bf16.msra.mxu0 %v995
        %1031 = vmatpush.bf16.msra.mxu0 %v992
        %1032 = vmatpush.bf16.msra.mxu0 %v989
        %1033 = vmatpush.bf16.msra.mxu0 %v986
        %1034 = vmatpush.bf16.msra.mxu0 %v983
        %1035 = vmatpush.bf16.msra.mxu0 %v980
        %1036 = vmatmul.bf16.gmra.mxu0 %v899
        %v1037 = vpop.f32.mrf.mxu0
        %v1038 = vadd.f32 0.0, %v1037
        %v1039 = vpop.f32.mrf.mxu0
        %v1040 = vadd.f32 0.0, %v1039
        %1041 = vdwg.mxu0
        %1042 = vmatpush.bf16.msra.mxu0 %v1002
        %1043 = vmatpush.bf16.msra.mxu0 %v999
        %1044 = vmatpush.bf16.msra.mxu0 %v996
        %1045 = vmatpush.bf16.msra.mxu0 %v993
        %1046 = vmatpush.bf16.msra.mxu0 %v990
        %1047 = vmatpush.bf16.msra.mxu0 %v987
        %1048 = vmatpush.bf16.msra.mxu0 %v984
        %1049 = vmatpush.bf16.msra.mxu0 %v981
        %1050 = vmatmul.bf16.gmra.mxu0 %v899
        %v1051 = vpop.f32.mrf.mxu0
        %v1052 = vadd.f32 0.0, %v1051
        %v1053 = vpop.f32.mrf.mxu0
        %v1054 = vadd.f32 0.0, %v1053
        %1055 = vdwg.mxu0
        %1056 = vmatpush.bf16.msra.mxu0 %v1003
        %1057 = vmatpush.bf16.msra.mxu0 %v1000
        %1058 = vmatpush.bf16.msra.mxu0 %v997
        %1059 = vmatpush.bf16.msra.mxu0 %v994
        %1060 = vmatpush.bf16.msra.mxu0 %v991
        %1061 = vmatpush.bf16.msra.mxu0 %v988
        %1062 = vmatpush.bf16.msra.mxu0 %v985
        %1063 = vmatpush.bf16.msra.mxu0 %v982
        %1064 = vmatmul.bf16.gmra.mxu0 %v899
        %v1065 = vpop.f32.mrf.mxu0
        %v1066 = vadd.f32 0.0, %v1065
        %v1067 = vpop.f32.mrf.mxu0
        %v1068 = vadd.f32 0.0, %v1067
        %1069 = vdwg.mxu0
        %v1070 = vperm.slane %v747, 2
        %v1071 = vadd.f32 %v1038, %v1070
        %v1072 = vadd.f32 %v1040, %v1070
        %v1073 = vperm.slane %v747, 3
        %v1074 = vadd.f32 %v1052, %v1073
        %v1075 = vadd.f32 %v1054, %v1073
        %v1076 = vperm.slane %v747, 4
        %v1077 = vadd.f32 %v1066, %v1076
        %v1078 = vadd.f32 %v1068, %v1076
        %v1079 = vperm.slane %v746, 0
        %v1080 = vmul.f32 %v1071, %v1079
        %v1081 = vmul.f32 %v1072, %v1079
        %1082 = vmatpush.xpose.msra.mxu0 0.0
        %1083 = vmatpush.xpose.msra.mxu0 0.0
        %1084 = vmatpush.xpose.msra.mxu0 0.0
        %1085 = vmatpush.xpose.msra.mxu0 0.0
        %1086 = vmatpush.xpose.msra.mxu0 0.0
        %1087 = vmatpush.xpose.msra.mxu0 0.0
        %1088 = vmatpush.xpose.msra.mxu0 0.0
        %1089 = vmatpush.xpose.msra.mxu0 0.0
        %1090 = vmatpush.xpose.msra.mxu0 0.0
        %1091 = vmatpush.xpose.msra.mxu0 0.0
        %1092 = vmatpush.xpose.msra.mxu0 0.0
        %1093 = vmatpush.xpose.msra.mxu0 0.0
        %1094 = vmatpush.xpose.msra.mxu0 0.0
        %1095 = vmatpush.xpose.msra.mxu0 0.0
        %1096 = vmatpush.xpose.msra.mxu0 %v1075
        %1097 = vmatpush.xpose.msra.mxu0 %v1074
        %1098 = vmatmul.f32.gmra.mxu0 %v1080
        %v1099 = vpop.f32.mrf.mxu0
        %v1100 = vadd.f32 0.0, %v1099
        %1101 = vmatmul.f32.gmra.mxu0 %v1081
        %v1102 = vpop.f32.mrf.mxu0
        %v1103 = vadd.f32 0.0, %v1102
        %1104 = vdwg.mxu0
        %v1105 = vmul.f32 %v1100, 0.125
        %v1106 = vmul.f32 %v1103, 0.125
        %v1107 = vadd.f32 %v1105, %v744
        %v1108 = vadd.f32 %v1106, %v745
        %vm1109 = vcmask 130048
        %v1110 = vsel %vm1109, %v1107, -inf
        %1111 = vmax.xlane.f32.xlu0 %v1110
        %v1112 = vpop.xlane.xlu0 %1111
        %v1113 = vsel %vm1109, %v1108, -inf
        %1114 = vmax.xlane.f32.xlu0 %v1113
        %v1115 = vpop.xlane.xlu0 %1114
        %v1116 = vsub.f32 %v1107, %v1112
        %v1117 = vsub.f32 %v1108, %v1115
        %v1118 = vmul.f32 %v1116, 1.442695
        %v1119 = vpow.pop %v1118
        %v1120 = vmul.f32 %v1117, 1.442695
        %v1121 = vpow.pop %v1120
        %v1122 = vsel %vm1109, %v1119, 0.0
        %1123 = vadd.xlane.f32.xlu0 %v1122
        %v1124 = vpop.xlane.xlu0 %1123
        %v1125 = vsel %vm1109, %v1121, 0.0
        %1126 = vadd.xlane.f32.xlu0 %v1125
        %v1127 = vpop.xlane.xlu0 %1126
        %v1128 = vrcp.pop %v1124
        %v1129 = vrcp.pop %v1127
        %v1130 = vmul.f32 %v1119, %v1128
        %v1131 = vmul.f32 %v1121, %v1129
        %v1132 = vmul.f32 %v1077, %v1079
        %v1133 = vmul.f32 %v1078, %v1079
        %v1134 = vperm.slane %v746, 1
        %v1135 = vmul.f32 %v1071, %v1134
        %v1136 = vmul.f32 %v1072, %v1134
        %1137 = vmatpush.xpose.msra.mxu0 0.0
        %1138 = vmatpush.xpose.msra.mxu0 0.0
        %1139 = vmatpush.xpose.msra.mxu0 0.0
        %1140 = vmatpush.xpose.msra.mxu0 0.0
        %1141 = vmatpush.xpose.msra.mxu0 0.0
        %1142 = vmatpush.xpose.msra.mxu0 0.0
        %1143 = vmatpush.xpose.msra.mxu0 0.0
        %1144 = vmatpush.xpose.msra.mxu0 0.0
        %1145 = vmatpush.xpose.msra.mxu0 0.0
        %1146 = vmatpush.xpose.msra.mxu0 0.0
        %1147 = vmatpush.xpose.msra.mxu0 0.0
        %1148 = vmatpush.xpose.msra.mxu0 0.0
        %1149 = vmatpush.xpose.msra.mxu0 0.0
        %1150 = vmatpush.xpose.msra.mxu0 0.0
        %1151 = vmatpush.xpose.msra.mxu0 %v1075
        %1152 = vmatpush.xpose.msra.mxu0 %v1074
        %1153 = vmatmul.f32.gmra.mxu0 %v1135
        %v1154 = vpop.f32.mrf.mxu0
        %v1155 = vadd.f32 0.0, %v1154
        %1156 = vmatmul.f32.gmra.mxu0 %v1136
        %v1157 = vpop.f32.mrf.mxu0
        %v1158 = vadd.f32 0.0, %v1157
        %1159 = vdwg.mxu0
        %v1160 = vmul.f32 %v1155, 0.125
        %v1161 = vmul.f32 %v1158, 0.125
        %v1162 = vadd.f32 %v1160, %v744
        %v1163 = vadd.f32 %v1161, %v745
        %v1164 = vsel %vm1109, %v1162, -inf
        %1165 = vmax.xlane.f32.xlu0 %v1164
        %v1166 = vpop.xlane.xlu0 %1165
        %v1167 = vsel %vm1109, %v1163, -inf
        %1168 = vmax.xlane.f32.xlu0 %v1167
        %v1169 = vpop.xlane.xlu0 %1168
        %v1170 = vsub.f32 %v1162, %v1166
        %v1171 = vsub.f32 %v1163, %v1169
        %v1172 = vmul.f32 %v1170, 1.442695
        %v1173 = vpow.pop %v1172
        %v1174 = vmul.f32 %v1171, 1.442695
        %v1175 = vpow.pop %v1174
        %v1176 = vsel %vm1109, %v1173, 0.0
        %1177 = vadd.xlane.f32.xlu0 %v1176
        %v1178 = vpop.xlane.xlu0 %1177
        %v1179 = vsel %vm1109, %v1175, 0.0
        %1180 = vadd.xlane.f32.xlu0 %v1179
        %v1181 = vpop.xlane.xlu0 %1180
        %v1182 = vrcp.pop %v1178
        %v1183 = vrcp.pop %v1181
        %v1184 = vmul.f32 %v1173, %v1182
        %v1185 = vmul.f32 %v1175, %v1183
        %v1186 = vmul.f32 %v1077, %v1134
        %v1187 = vmul.f32 %v1078, %v1134
        %v1189 = vsel %vm1109, %v1184, 0
        %v1192 = vsel %vm1109, %v1185, 0
        %1194 = vmatpush.msra.mxu0 0.0
        %1195 = vmatpush.msra.mxu0 0.0
        %1196 = vmatpush.msra.mxu0 0.0
        %1197 = vmatpush.msra.mxu0 0.0
        %1198 = vmatpush.msra.mxu0 0.0
        %1199 = vmatpush.msra.mxu0 0.0
        %1200 = vmatpush.msra.mxu0 0.0
        %1201 = vmatpush.msra.mxu0 0.0
        %1202 = vmatpush.msra.mxu0 0.0
        %1203 = vmatpush.msra.mxu0 0.0
        %1204 = vmatpush.msra.mxu0 0.0
        %1205 = vmatpush.msra.mxu0 0.0
        %1206 = vmatpush.msra.mxu0 0.0
        %1207 = vmatpush.msra.mxu0 0.0
        %1208 = vmatpush.msra.mxu0 %v1187
        %1209 = vmatpush.msra.mxu0 %v1186
        %1210 = vmatmul.f32.gmra.mxu0 %v1189
        %v1211 = vpop.f32.mrf.mxu0
        %v1212 = vadd.f32 0.0, %v1211
        %1213 = vmatmul.f32.gmra.mxu0 %v1192
        %v1214 = vpop.f32.mrf.mxu0
        %v1215 = vadd.f32 0.0, %v1214
        %1216 = vdwg.mxu0
        %v1218 = vsel %vm1109, %v1130, 0
        %v1221 = vsel %vm1109, %v1131, 0
        %1223 = vmatpush.msra.mxu0 0.0
        %1224 = vmatpush.msra.mxu0 0.0
        %1225 = vmatpush.msra.mxu0 0.0
        %1226 = vmatpush.msra.mxu0 0.0
        %1227 = vmatpush.msra.mxu0 0.0
        %1228 = vmatpush.msra.mxu0 0.0
        %1229 = vmatpush.msra.mxu0 0.0
        %1230 = vmatpush.msra.mxu0 0.0
        %1231 = vmatpush.msra.mxu0 0.0
        %1232 = vmatpush.msra.mxu0 0.0
        %1233 = vmatpush.msra.mxu0 0.0
        %1234 = vmatpush.msra.mxu0 0.0
        %1235 = vmatpush.msra.mxu0 0.0
        %1236 = vmatpush.msra.mxu0 0.0
        %1237 = vmatpush.msra.mxu0 %v1133
        %1238 = vmatpush.msra.mxu0 %v1132
        %1239 = vmatmul.f32.gmra.mxu0 %v1218
        %v1240 = vpop.f32.mrf.mxu0
        %v1241 = vadd.f32 %v1212, %v1240
        %1242 = vmatmul.f32.gmra.mxu0 %v1221
        %v1243 = vpop.f32.mrf.mxu0
        %v1244 = vadd.f32 %v1215, %v1243
        %1245 = vdwg.mxu0
        %v1246 = vpack.c.bf16 %v1244, %v1241
        %v1263 = vunpack.c.l.b16 %v781
        %v1264 = vunpack.c.l.b16 %v782
        %v1265 = vunpack.c.l.b16 %v783
        %v1266 = vunpack.c.l.b16 %v784
        %v1267 = vunpack.c.l.b16 %v785
        %v1268 = vunpack.c.l.b16 %v786
        %v1269 = vunpack.c.l.b16 %v787
        %v1270 = vunpack.c.l.b16 %v788
        %v1271 = vunpack.c.l.b16 %v789
        %v1272 = vunpack.c.l.b16 %v790
        %v1273 = vunpack.c.l.b16 %v791
        %v1274 = vunpack.c.l.b16 %v792
        %v1275 = vunpack.c.l.b16 %v793
        %v1276 = vunpack.c.l.b16 %v794
        %v1277 = vunpack.c.l.b16 %v795
        %v1278 = vunpack.c.l.b16 %v796
        %v1279 = vpack.c.b16 %v1264, %v1263
        %v1280 = vpack.c.b16 %v1266, %v1265
        %v1281 = vpack.c.b16 %v1268, %v1267
        %v1282 = vpack.c.b16 %v1270, %v1269
        %v1283 = vpack.c.b16 %v1272, %v1271
        %v1284 = vpack.c.b16 %v1274, %v1273
        %v1285 = vpack.c.b16 %v1276, %v1275
        %v1286 = vpack.c.b16 %v1278, %v1277
        %1295 = vmatpush.bf16.msra.mxu0 %v1286
        %1296 = vmatpush.bf16.msra.mxu0 %v1285
        %1297 = vmatpush.bf16.msra.mxu0 %v1284
        %1298 = vmatpush.bf16.msra.mxu0 %v1283
        %1299 = vmatpush.bf16.msra.mxu0 %v1282
        %1300 = vmatpush.bf16.msra.mxu0 %v1281
        %1301 = vmatpush.bf16.msra.mxu0 %v1280
        %1302 = vmatpush.bf16.msra.mxu0 %v1279
        %1303 = vmatmul.bf16.gmra.mxu0 %v1246
        %v1304 = vpop.f32.mrf.mxu0
        %v1305 = vadd.f32 0.0, %v1304
        %v1306 = vpop.f32.mrf.mxu0
        %v1307 = vadd.f32 0.0, %v1306
        %1308 = vdwg.mxu0
        %v1309 = vadd.f32 %v742, %v1305
        %v1310 = vadd.f32 %v743, %v1307
        %v1311 = vperm.slane %v747, 5
        %v1312 = vadd.f32 %v1309, %v1311
        %v1313 = vadd.f32 %v1310, %v1311
        %1314 = vadd.xlane.f32.xlu0 %v1312
        %v1315 = vpop.xlane.xlu0 %1314
        %1316 = vadd.xlane.f32.xlu0 %v1313
        %v1317 = vpop.xlane.xlu0 %1316
        %v1318 = vmul.f32 %v1315, %v856
        %v1319 = vmul.f32 %v1317, %v856
        %v1320 = vsub.f32 %v1312, %v1318
        %v1321 = vsub.f32 %v1313, %v1319
        %v1322 = vmul.f32 %v1320, %v1320
        %v1323 = vmul.f32 %v1321, %v1321
        %1324 = vadd.xlane.f32.xlu0 %v1322
        %v1325 = vpop.xlane.xlu0 %1324
        %1326 = vadd.xlane.f32.xlu0 %v1323
        %v1327 = vpop.xlane.xlu0 %1326
        %v1328 = vmul.f32 %v1325, %v856
        %v1329 = vmul.f32 %v1327, %v856
        %v1330 = vadd.f32 %v1328, 1e-05
        %v1331 = vadd.f32 %v1329, 1e-05
        %v1332 = vrsqrt.pop %v1330
        %v1333 = vmul.f32 %v1332, %v1330
        %v1334 = vmul.f32 %v1333, %v1332
        %v1335 = vmul.f32 0.5, %v1334
        %v1336 = vsub.f32 1.5, %v1335
        %v1337 = vmul.f32 %v1332, %v1336
        %vm1338 = vweird.f32 %v1330
        %vm1339 = vweird.f32 %v1332
        %vm1340 = vmor %vm1338, %vm1339
        %v1341 = vsel %vm1340, %v1332, %v1337
        %v1342 = vrsqrt.pop %v1331
        %v1343 = vmul.f32 %v1342, %v1331
        %v1344 = vmul.f32 %v1343, %v1342
        %v1345 = vmul.f32 0.5, %v1344
        %v1346 = vsub.f32 1.5, %v1345
        %v1347 = vmul.f32 %v1342, %v1346
        %vm1348 = vweird.f32 %v1331
        %vm1349 = vweird.f32 %v1342
        %vm1350 = vmor %vm1348, %vm1349
        %v1351 = vsel %vm1350, %v1342, %v1347
        %v1352 = vmul.f32 %v1320, %v1341
        %v1353 = vmul.f32 %v1321, %v1351
        %v1354 = vperm.slane %v747, 6
        %v1355 = vmul.f32 %v1352, %v1354
        %v1356 = vmul.f32 %v1353, %v1354
        %v1357 = vperm.slane %v747, 7
        %v1358 = vadd.f32 %v1355, %v1357
        %v1359 = vadd.f32 %v1356, %v1357
        %v1360 = vpack.c.bf16 %v1359, %v1358
        %v1362 = vperm.slane %v845, 0
        %v1363 = vperm.slane %v845, 1
        %v1382 = vunpack.c.l.b16 %v797
        %v1383 = vunpack.c.h.b16 %v797
        %v1384 = vunpack.c.l.b16 %v798
        %v1385 = vunpack.c.h.b16 %v798
        %v1386 = vunpack.c.l.b16 %v799
        %v1387 = vunpack.c.h.b16 %v799
        %v1388 = vunpack.c.l.b16 %v800
        %v1389 = vunpack.c.h.b16 %v800
        %v1390 = vunpack.c.l.b16 %v801
        %v1391 = vunpack.c.h.b16 %v801
        %v1392 = vunpack.c.l.b16 %v802
        %v1393 = vunpack.c.h.b16 %v802
        %v1394 = vunpack.c.l.b16 %v803
        %v1395 = vunpack.c.h.b16 %v803
        %v1396 = vunpack.c.l.b16 %v804
        %v1397 = vunpack.c.h.b16 %v804
        %v1398 = vunpack.c.l.b16 %v805
        %v1399 = vunpack.c.h.b16 %v805
        %v1400 = vunpack.c.l.b16 %v806
        %v1401 = vunpack.c.h.b16 %v806
        %v1402 = vunpack.c.l.b16 %v807
        %v1403 = vunpack.c.h.b16 %v807
        %v1404 = vunpack.c.l.b16 %v808
        %v1405 = vunpack.c.h.b16 %v808
        %v1406 = vunpack.c.l.b16 %v809
        %v1407 = vunpack.c.h.b16 %v809
        %v1408 = vunpack.c.l.b16 %v810
        %v1409 = vunpack.c.h.b16 %v810
        %v1410 = vunpack.c.l.b16 %v811
        %v1411 = vunpack.c.h.b16 %v811
        %v1412 = vunpack.c.l.b16 %v812
        %v1413 = vunpack.c.h.b16 %v812
        %v1414 = vpack.c.b16 %v1384, %v1382
        %v1415 = vpack.c.b16 %v1385, %v1383
        %v1416 = vpack.c.b16 %v1388, %v1386
        %v1417 = vpack.c.b16 %v1389, %v1387
        %v1418 = vpack.c.b16 %v1392, %v1390
        %v1419 = vpack.c.b16 %v1393, %v1391
        %v1420 = vpack.c.b16 %v1396, %v1394
        %v1421 = vpack.c.b16 %v1397, %v1395
        %v1422 = vpack.c.b16 %v1400, %v1398
        %v1423 = vpack.c.b16 %v1401, %v1399
        %v1424 = vpack.c.b16 %v1404, %v1402
        %v1425 = vpack.c.b16 %v1405, %v1403
        %v1426 = vpack.c.b16 %v1408, %v1406
        %v1427 = vpack.c.b16 %v1409, %v1407
        %v1428 = vpack.c.b16 %v1412, %v1410
        %v1429 = vpack.c.b16 %v1413, %v1411
        %1446 = vmatpush.bf16.msra.mxu0 %v1428
        %1447 = vmatpush.bf16.msra.mxu0 %v1426
        %1448 = vmatpush.bf16.msra.mxu0 %v1424
        %1449 = vmatpush.bf16.msra.mxu0 %v1422
        %1450 = vmatpush.bf16.msra.mxu0 %v1420
        %1451 = vmatpush.bf16.msra.mxu0 %v1418
        %1452 = vmatpush.bf16.msra.mxu0 %v1416
        %1453 = vmatpush.bf16.msra.mxu0 %v1414
        %1454 = vmatmul.bf16.gmra.mxu0 %v1360
        %v1455 = vpop.f32.mrf.mxu0
        %v1456 = vadd.f32 %v1362, %v1455
        %v1457 = vpop.f32.mrf.mxu0
        %v1458 = vadd.f32 %v1362, %v1457
        %1459 = vdwg.mxu0
        %1460 = vmatpush.bf16.msra.mxu0 %v1429
        %1461 = vmatpush.bf16.msra.mxu0 %v1427
        %1462 = vmatpush.bf16.msra.mxu0 %v1425
        %1463 = vmatpush.bf16.msra.mxu0 %v1423
        %1464 = vmatpush.bf16.msra.mxu0 %v1421
        %1465 = vmatpush.bf16.msra.mxu0 %v1419
        %1466 = vmatpush.bf16.msra.mxu0 %v1417
        %1467 = vmatpush.bf16.msra.mxu0 %v1415
        %1468 = vmatmul.bf16.gmra.mxu0 %v1360
        %v1469 = vpop.f32.mrf.mxu0
        %v1470 = vadd.f32 %v1363, %v1469
        %v1471 = vpop.f32.mrf.mxu0
        %v1472 = vadd.f32 %v1363, %v1471
        %1473 = vdwg.mxu0
        %v1474 = vmax.f32 %v1456, 0.0
        %v1475 = vmax.f32 %v1470, 0.0
        %v1476 = vmax.f32 %v1458, 0.0
        %v1477 = vmax.f32 %v1472, 0.0
        %v1478 = vpack.c.bf16 %v1476, %v1474
        %v1479 = vpack.c.bf16 %v1477, %v1475
        %v1512 = vunpack.c.l.b16 %v813
        %v1513 = vunpack.c.l.b16 %v814
        %v1514 = vunpack.c.l.b16 %v815
        %v1515 = vunpack.c.l.b16 %v816
        %v1516 = vunpack.c.l.b16 %v817
        %v1517 = vunpack.c.l.b16 %v818
        %v1518 = vunpack.c.l.b16 %v819
        %v1519 = vunpack.c.l.b16 %v820
        %v1520 = vunpack.c.l.b16 %v821
        %v1521 = vunpack.c.l.b16 %v822
        %v1522 = vunpack.c.l.b16 %v823
        %v1523 = vunpack.c.l.b16 %v824
        %v1524 = vunpack.c.l.b16 %v825
        %v1525 = vunpack.c.l.b16 %v826
        %v1526 = vunpack.c.l.b16 %v827
        %v1527 = vunpack.c.l.b16 %v828
        %v1528 = vunpack.c.l.b16 %v829
        %v1529 = vunpack.c.l.b16 %v830
        %v1530 = vunpack.c.l.b16 %v831
        %v1531 = vunpack.c.l.b16 %v832
        %v1532 = vunpack.c.l.b16 %v833
        %v1533 = vunpack.c.l.b16 %v834
        %v1534 = vunpack.c.l.b16 %v835
        %v1535 = vunpack.c.l.b16 %v836
        %v1536 = vunpack.c.l.b16 %v837
        %v1537 = vunpack.c.l.b16 %v838
        %v1538 = vunpack.c.l.b16 %v839
        %v1539 = vunpack.c.l.b16 %v840
        %v1540 = vunpack.c.l.b16 %v841
        %v1541 = vunpack.c.l.b16 %v842
        %v1542 = vunpack.c.l.b16 %v843
        %v1543 = vunpack.c.l.b16 %v844
        %v1544 = vpack.c.b16 %v1513, %v1512
        %v1545 = vpack.c.b16 %v1515, %v1514
        %v1546 = vpack.c.b16 %v1517, %v1516
        %v1547 = vpack.c.b16 %v1519, %v1518
        %v1548 = vpack.c.b16 %v1521, %v1520
        %v1549 = vpack.c.b16 %v1523, %v1522
        %v1550 = vpack.c.b16 %v1525, %v1524
        %v1551 = vpack.c.b16 %v1527, %v1526
        %v1552 = vpack.c.b16 %v1529, %v1528
        %v1553 = vpack.c.b16 %v1531, %v1530
        %v1554 = vpack.c.b16 %v1533, %v1532
        %v1555 = vpack.c.b16 %v1535, %v1534
        %v1556 = vpack.c.b16 %v1537, %v1536
        %v1557 = vpack.c.b16 %v1539, %v1538
        %v1558 = vpack.c.b16 %v1541, %v1540
        %v1559 = vpack.c.b16 %v1543, %v1542
        %1576 = vmatpush.bf16.msra.mxu0 %v1551
        %1577 = vmatpush.bf16.msra.mxu0 %v1550
        %1578 = vmatpush.bf16.msra.mxu0 %v1549
        %1579 = vmatpush.bf16.msra.mxu0 %v1548
        %1580 = vmatpush.bf16.msra.mxu0 %v1547
        %1581 = vmatpush.bf16.msra.mxu0 %v1546
        %1582 = vmatpush.bf16.msra.mxu0 %v1545
        %1583 = vmatpush.bf16.msra.mxu0 %v1544
        %1584 = vmatmul.bf16.gmra.mxu0 %v1478
        %v1585 = vpop.f32.mrf.mxu0
        %v1586 = vadd.f32 0.0, %v1585
        %v1587 = vpop.f32.mrf.mxu0
        %v1588 = vadd.f32 0.0, %v1587
        %1589 = vdwg.mxu0
        %1590 = vmatpush.bf16.msra.mxu0 %v1559
        %1591 = vmatpush.bf16.msra.mxu0 %v1558
        %1592 = vmatpush.bf16.msra.mxu0 %v1557
        %1593 = vmatpush.bf16.msra.mxu0 %v1556
        %1594 = vmatpush.bf16.msra.mxu0 %v1555
        %1595 = vmatpush.bf16.msra.mxu0 %v1554
        %1596 = vmatpush.bf16.msra.mxu0 %v1553
        %1597 = vmatpush.bf16.msra.mxu0 %v1552
        %1598 = vmatmul.bf16.gmra.mxu0 %v1479
        %v1599 = vpop.f32.mrf.mxu0
        %v1600 = vadd.f32 %v1586, %v1599
        %v1601 = vpop.f32.mrf.mxu0
        %v1602 = vadd.f32 %v1588, %v1601
        %1603 = vdwg.mxu0
        %v1604 = vadd.f32 %v1312, %v1600
        %v1605 = vadd.f32 %v1313, %v1602
        %v1606 = vperm.slane %v748, 0
        %v1607 = vadd.f32 %v1604, %v1606
        %v1608 = vadd.f32 %v1605, %v1606
        %1609 = vst [vmem:[#allocation2] sm:$0xff] %v1607
        %1610 = vst [vmem:[#allocation2 + $0x8] sm:$0xff] %v1608
        %p1611 = scmp.eq.s32.totalorder %s26, 2
        // Predicated region
        $region101: #{forward.1} parent=71 // pred_check
          %p1612 = pneg %p1611
        $region102: #{forward.1} parent=71 // pred_check_branch
          %1614 = sbr.rel (%p1612) target = $region104
        $region103: #{forward.1} parent=71 // pred_region
          %v1615 = vld [vmem:[%s12] sm:$0x1]
          %v1616 = vld [vmem:[%s12 + $0x1] sm:$0x1]
          %1617 = vadd.xlane.f32.xlu0 %v1607
          %v1618 = vpop.xlane.xlu0 %1617
          %1619 = vadd.xlane.f32.xlu0 %v1608
          %v1620 = vpop.xlane.xlu0 %1619
          %v1621 = vmul.f32 %v1618, %v856
          %v1622 = vmul.f32 %v1620, %v856
          %v1623 = vsub.f32 %v1607, %v1621
          %v1624 = vsub.f32 %v1608, %v1622
          %v1625 = vmul.f32 %v1623, %v1623
          %v1626 = vmul.f32 %v1624, %v1624
          %1627 = vadd.xlane.f32.xlu0 %v1625
          %v1628 = vpop.xlane.xlu0 %1627
          %1629 = vadd.xlane.f32.xlu0 %v1626
          %v1630 = vpop.xlane.xlu0 %1629
          %v1631 = vmul.f32 %v1628, %v856
          %v1632 = vmul.f32 %v1630, %v856
          %v1633 = vadd.f32 %v1631, 1e-05
          %v1634 = vadd.f32 %v1632, 1e-05
          %v1635 = vrsqrt.pop %v1633
          %v1636 = vmul.f32 %v1635, %v1633
          %v1637 = vmul.f32 %v1636, %v1635
          %v1638 = vmul.f32 0.5, %v1637
          %v1639 = vsub.f32 1.5, %v1638
          %v1640 = vmul.f32 %v1635, %v1639
          %vm1641 = vweird.f32 %v1633
          %vm1642 = vweird.f32 %v1635
          %vm1643 = vmor %vm1641, %vm1642
          %v1644 = vsel %vm1643, %v1635, %v1640
          %v1645 = vrsqrt.pop %v1634
          %v1646 = vmul.f32 %v1645, %v1634
          %v1647 = vmul.f32 %v1646, %v1645
          %v1648 = vmul.f32 0.5, %v1647
          %v1649 = vsub.f32 1.5, %v1648
          %v1650 = vmul.f32 %v1645, %v1649
          %vm1651 = vweird.f32 %v1634
          %vm1652 = vweird.f32 %v1645
          %vm1653 = vmor %vm1651, %vm1652
          %v1654 = vsel %vm1653, %v1645, %v1650
          %v1655 = vmul.f32 %v1623, %v1644
          %v1656 = vmul.f32 %v1624, %v1654
          %v1657 = vperm.slane %v1615, 0
          %v1658 = vmul.f32 %v1655, %v1657
          %v1659 = vmul.f32 %v1656, %v1657
          %v1660 = vperm.slane %v1616, 0
          %v1661 = vadd.f32 %v1658, %v1660
          %v1662 = vadd.f32 %v1659, %v1660
          %v1663 = vpack.c.bf16 %v1662, %v1661
          %v1664 = vld [vmem:[#allocation5] sm:$0xff]
          %v1665 = vld [vmem:[#allocation5 + $0x8] sm:$0xff]
          %v1666 = vld [vmem:[#allocation5 + $0x10] sm:$0xff]
          %v1667 = vld [vmem:[#allocation5 + $0x18] sm:$0xff]
          %v1668 = vld [vmem:[#allocation5 + $0x20] sm:$0xff]
          %v1669 = vld [vmem:[#allocation5 + $0x28] sm:$0xff]
          %v1670 = vld [vmem:[#allocation5 + $0x30] sm:$0xff]
          %v1671 = vld [vmem:[#allocation5 + $0x38] sm:$0xff]
          %v1672 = vld [vmem:[#allocation5 + $0x40] sm:$0xff]
          %v1673 = vld [vmem:[#allocation5 + $0x48] sm:$0xff]
          %v1674 = vld [vmem:[#allocation5 + $0x50] sm:$0xff]
          %v1675 = vld [vmem:[#allocation5 + $0x58] sm:$0xff]
          %v1676 = vld [vmem:[#allocation5 + $0x60] sm:$0xff]
          %v1677 = vld [vmem:[#allocation5 + $0x68] sm:$0xff]
          %v1678 = vld [vmem:[#allocation5 + $0x70] sm:$0xff]
          %v1679 = vld [vmem:[#allocation5 + $0x78] sm:$0xff]
          %v1696 = vunpack.c.l.b16 %v1664
          %v1697 = vunpack.c.h.b16 %v1664
          %v1698 = vunpack.c.l.b16 %v1665
          %v1699 = vunpack.c.h.b16 %v1665
          %v1700 = vunpack.c.l.b16 %v1666
          %v1701 = vunpack.c.h.b16 %v1666
          %v1702 = vunpack.c.l.b16 %v1667
          %v1703 = vunpack.c.h.b16 %v1667
          %v1704 = vunpack.c.l.b16 %v1668
          %v1705 = vunpack.c.h.b16 %v1668
          %v1706 = vunpack.c.l.b16 %v1669
          %v1707 = vunpack.c.h.b16 %v1669
          %v1708 = vunpack.c.l.b16 %v1670
          %v1709 = vunpack.c.h.b16 %v1670
          %v1710 = vunpack.c.l.b16 %v1671
          %v1711 = vunpack.c.h.b16 %v1671
          %v1712 = vunpack.c.l.b16 %v1672
          %v1713 = vunpack.c.h.b16 %v1672
          %v1714 = vunpack.c.l.b16 %v1673
          %v1715 = vunpack.c.h.b16 %v1673
          %v1716 = vunpack.c.l.b16 %v1674
          %v1717 = vunpack.c.h.b16 %v1674
          %v1718 = vunpack.c.l.b16 %v1675
          %v1719 = vunpack.c.h.b16 %v1675
          %v1720 = vunpack.c.l.b16 %v1676
          %v1721 = vunpack.c.h.b16 %v1676
          %v1722 = vunpack.c.l.b16 %v1677
          %v1723 = vunpack.c.h.b16 %v1677
          %v1724 = vunpack.c.l.b16 %v1678
          %v1725 = vunpack.c.h.b16 %v1678
          %v1726 = vunpack.c.l.b16 %v1679
          %v1727 = vunpack.c.h.b16 %v1679
          %v1728 = vpack.c.b16 %v1698, %v1696
          %v1729 = vpack.c.b16 %v1699, %v1697
          %v1730 = vpack.c.b16 %v1702, %v1700
          %v1731 = vpack.c.b16 %v1703, %v1701
          %v1732 = vpack.c.b16 %v1706, %v1704
          %v1733 = vpack.c.b16 %v1707, %v1705
          %v1734 = vpack.c.b16 %v1710, %v1708
          %v1735 = vpack.c.b16 %v1711, %v1709
          %v1736 = vpack.c.b16 %v1714, %v1712
          %v1737 = vpack.c.b16 %v1715, %v1713
          %v1738 = vpack.c.b16 %v1718, %v1716
          %v1739 = vpack.c.b16 %v1719, %v1717
          %v1740 = vpack.c.b16 %v1722, %v1720
          %v1741 = vpack.c.b16 %v1723, %v1721
          %v1742 = vpack.c.b16 %v1726, %v1724
          %v1743 = vpack.c.b16 %v1727, %v1725
          %1760 = vmatpush.bf16.msra.mxu0 %v1742
          %1761 = vmatpush.bf16.msra.mxu0 %v1740
          %1762 = vmatpush.bf16.msra.mxu0 %v1738
          %1763 = vmatpush.bf16.msra.mxu0 %v1736
          %1764 = vmatpush.bf16.msra.mxu0 %v1734
          %1765 = vmatpush.bf16.msra.mxu0 %v1732
          %1766 = vmatpush.bf16.msra.mxu0 %v1730
          %1767 = vmatpush.bf16.msra.mxu0 %v1728
          %1768 = vmatmul.bf16.gmra.mxu0 %v1663
          %v1769 = vpop.f32.mrf.mxu0
          %v1770 = vadd.f32 0.0, %v1769
          %v1771 = vpop.f32.mrf.mxu0
          %v1772 = vadd.f32 0.0, %v1771
          %1773 = vdwg.mxu0
          %1774 = vmatpush.bf16.msra.mxu0 %v1743
          %1775 = vmatpush.bf16.msra.mxu0 %v1741
          %1776 = vmatpush.bf16.msra.mxu0 %v1739
          %1777 = vmatpush.bf16.msra.mxu0 %v1737
          %1778 = vmatpush.bf16.msra.mxu0 %v1735
          %1779 = vmatpush.bf16.msra.mxu0 %v1733
          %1780 = vmatpush.bf16.msra.mxu0 %v1731
          %1781 = vmatpush.bf16.msra.mxu0 %v1729
          %1782 = vmatmul.bf16.gmra.mxu0 %v1663
          %v1783 = vpop.f32.mrf.mxu0
          %v1784 = vadd.f32 0.0, %v1783
          %v1785 = vpop.f32.mrf.mxu0
          %v1786 = vadd.f32 0.0, %v1785
          %1787 = vdwg.mxu0
          %1788 = vst [vmem:[%s13] sm:$0xff] %v1770
          %1789 = vst [vmem:[%s13 + $0x8] sm:$0xff] %v1784
          %1790 = vst [vmem:[%s13 + $0x10] sm:$0xff] %v1772
          %1791 = vst [vmem:[%s13 + $0x18] sm:$0xff] %v1786
        $region104: #{forward.1} parent=71 // pred_fallthru
          _
        // Predicated region
        $region105: #{forward.1} parent=71 // pred_check
          %p1792 = pneg %p342
        $region106: #{forward.1} parent=71 // pred_check_branch
          %1794 = sbr.rel (%p1792) target = $region108
        $region107: #{forward.1} parent=71 // pred_region
          _
        $region108: #{forward.1} parent=71 // pred_fallthru
          _
        // Predicated region
        $region109: #{forward.1} parent=71 // pred_check
          %p1795 = pneg %p342
        $region110: #{forward.1} parent=71 // pred_check_branch
          %1797 = sbr.rel (%p1795) target = $region112
        $region111: #{forward.1} parent=71 // pred_region
          _
        $region112: #{forward.1} parent=71 // pred_fallthru
          _
      $region72: #{forward.1} parent=5 // pred_fallthru
        _
      %p1798 = scmp.le.s32.totalorder 2, %s21
      // Predicated region
      $region113: #{forward.1} parent=5 // pred_check
        %p1799 = pneg %p1798
      $region114: #{forward.1} parent=5 // pred_check_branch
        %1801 = sbr.rel (%p1799) target = $region116
      $region115: #{forward.1} parent=5 // pred_region
        %s1802 = ssub.s32 %s21, 2
      $region116: #{forward.1} parent=5 // pred_fallthru
        _
    $region6: #{forward.1} parent=1 // loop_footer
      %s25 = sadd.s32 1, %s21
    $region7: #{forward.1} parent=1 // loop_footer_branch
      %20 = sbr.rel target = $region3
    $region8: #{forward.1} parent=1 // loop_exit
      _
    %1803 = vsyncpa [#allocation4], 1
    %s1804 = scalar_lea.sflag [#allocation4], 1
    %1805 = vsyncpa %s1804, 1
    %1806 = vsyncpa [#allocation6], 1

</llo_original>
